<compile_context>
chip_gen: v7x
topology: tpu7x:2x2x1
jax: 0.10.0
libtpu: 0.0.40
codegen_flags: <defaults>
</compile_context>

<pallas_src>
import numpy as np
import jax
import jax.numpy as jnp
from jax import lax
from jax.experimental import pallas as pl
from jax.experimental.pallas import tpu as pltpu


# -----------------------------------------------------------------------------
# Kernel
# -----------------------------------------------------------------------------
def lstm_cell_attention_kernel(x_ref, w1_ref, b1_ref, w2_ref, b2_ref,
                               wi_ref, bias_ref, wh_ref, fcw_ref, fcb_ref,
                               out_ref):
    Bb, S, F = x_ref.shape        # batch block, seq, feature
    H4 = wh_ref.shape[1]          # 4 * hidden
    H = H4 // 4
    R = w2_ref.shape[1]

    x3 = x_ref[...]                               # (Bb, S, F)
    x2 = x3.reshape(Bb * S, F)                    # in-kernel view; no 2nd DMA

    # ---------------- hoisted: attention scores (window independent) ----------
    z = jnp.tanh(jnp.dot(x2, w1_ref[...], preferred_element_type=jnp.float32)
                 + b1_ref[...])                                     # (Bb*S, d_a)
    sc = (jnp.dot(z, w2_ref[...], preferred_element_type=jnp.float32)
          + b2_ref[...]).reshape(Bb, S, R)                          # (Bb, S, r)

    # ---------------- hoisted: every causal softmax + context M_all -----------
    # softmax over window [0, t] for every t expressed with lower-triangular
    # matmuls (cumulative sums) -> no per-step max/exp/div in the recurrence.
    # A per-(b, j) global max is subtracted; the shift cancels algebraically
    # and the epsilon below guards the pathological full-underflow case.
    m = jnp.max(sc, axis=1, keepdims=True)
    e = jnp.exp(sc - m)                                             # (Bb, S, r)
    # Causal mask built once at (S, S); iotas never materialized at (B, S, S).
    t_id = lax.broadcasted_iota(jnp.int32, (S, S), 0)
    s_id = lax.broadcasted_iota(jnp.int32, (S, S), 1)
    tri = (s_id <= t_id).astype(jnp.float32)                        # (S, S)
    tri_b = jnp.broadcast_to(tri[None, :, :], (Bb, S, S))           # matmul lhs
    # cum_e[b, t, j] = sum_{s <= t} e[b, s, j]
    cum_e = jnp.einsum('bts,bsj->btj', tri_b, e,
                       preferred_element_type=jnp.float32)          # (Bb, S, r)
    # EUP approximate reciprocal (free VLIW slot); +1e-30 guards the
    # exp-underflow -> 1/0 NaN path.
    inv_cum = pl.reciprocal(cum_e + 1e-30, approx=True) * (1.0 / R)
    # w[b, t, s] = (1/r) * sum_j e[b, s, j] / cum_e[b, t, j]   (for s <= t)
    w_ts = jnp.einsum('btj,bsj->bts', inv_cum, e,
                      preferred_element_type=jnp.float32) * tri     # (Bb, S, S)
    # M_all[b, t, f] = sum_{s <= t} w[b, t, s] * x[b, s, f]
    M_all = jnp.einsum('bts,bsf->btf', w_ts, x3,
                       preferred_element_type=jnp.float32)          # (Bb, S, F)
    # NOTE: for long sequences replace the O(S^2) w_ts formulation with the
    # cumsum form (O(S*r*F)) and tile t via the grid.

    # ---------------- hoisted: fused input projection for all steps -----------
    gates_x = (jnp.dot(M_all.reshape(Bb * S, F), wi_ref[...],
                       preferred_element_type=jnp.float32)
               + bias_ref[...]).reshape(Bb, S, H4)                  # (Bb, S, 4H)

    # ---------------- serial recurrence: one matmul + elementwise per step ----
    wh = wh_ref[...]                     # (H, 4H), 4H = 128 -> lane-dense RHS
    h = jnp.zeros((Bb, H), dtype=jnp.float32)
    c = jnp.zeros((Bb, H), dtype=jnp.float32)
    # S small & static -> full Python unroll; switch to lax.fori_loop over a
    # VMEM gates scratch if S grows.
    for t in range(S):
        g = gates_x[:, t, :]             # (Bb, 4H)
        if t > 0:                        # h == 0 at t == 0 -> skip matmul
            g = g + jnp.dot(h, wh, preferred_element_type=jnp.float32)
        # Two full-width (Bb, 128) EUP passes instead of four 32-lane ones.
        sig = jax.nn.sigmoid(g)
        tnh = jnp.tanh(g)
        i_t = sig[:, 0 * H:1 * H]
        f_t = sig[:, 1 * H:2 * H]
        g_t = tnh[:, 2 * H:3 * H]
        o_t = sig[:, 3 * H:4 * H]
        c = f_t * c + i_t * g_t
        h = o_t * jnp.tanh(c)

    # Final classifier on the last hidden state (output[:, -1, :] in PyTorch).
    # Kept as a separate tiny matmul: packing fc_w into wh's columns would push
    # the per-step RHS width past 128 lanes (regression risk on v5e's MXU).
    out = jnp.dot(h, fcw_ref[...], preferred_element_type=jnp.float32) + fcb_ref[...]
    out_ref[...] = out[:, None, :]       # (Bb, 1, C)


# -----------------------------------------------------------------------------
# Wrapper
# -----------------------------------------------------------------------------
def _default_batch_blocks(batch):
    """v7x has 2 TensorCores/chip: split the batch across them via the grid.
    On v5e/v6e (single TC) a batch grid would only serialize the recurrence."""
    try:
        kind = jax.devices()[0].device_kind.lower()
    except Exception:
        return 1
    if ("v7" in kind or "7x" in kind) and batch % 2 == 0:
        return 2
    return 1


def lstm_with_input_cell_attention(x_ncl, params, batch_blocks=None):
    """x_ncl: (batch, ch_in, seq) -- same input convention as the torch module."""
    # TODO(synk): nn.Dropout(rnndropout) is identity at inference; training-mode
    # stochastic dropout is not modeled in the kernel.
    x = jnp.transpose(x_ncl, (0, 2, 1)).astype(jnp.float32)          # (B, S, F)
    B, S, F = x.shape
    H = params["weight_hh"].shape[0]
    C = params["fc_w"].shape[1]
    D_A = params["w1"].shape[1]
    R = params["w2"].shape[1]

    if batch_blocks is None:
        batch_blocks = _default_batch_blocks(B)
    assert B % batch_blocks == 0, "batch must divide evenly into batch blocks"
    Bb = B // batch_blocks

    bias2d = params["bias"].reshape(1, 4 * H)

    def full_spec(shape):
        # Whole-array block, same block every grid step (weights are a few KiB).
        return pl.BlockSpec(shape, lambda b: (0,) * len(shape))

    out = pl.pallas_call(
        lstm_cell_attention_kernel,
        out_shape=jax.ShapeDtypeStruct((B, 1, C), jnp.float32),
        grid=(batch_blocks,),
        in_specs=[
            pl.BlockSpec((Bb, S, F), lambda b: (b, 0, 0)),           # x
            full_spec((F, D_A)),                                     # w1
            full_spec((1, D_A)),                                     # b1
            full_spec((D_A, R)),                                     # w2
            full_spec((1, R)),                                       # b2
            full_spec((F, 4 * H)),                                   # weight_iBarh
            full_spec((1, 4 * H)),                                   # bias
            full_spec((H, 4 * H)),                                   # weight_hh
            full_spec((H, C)),                                       # fc_w
            full_spec((1, C)),                                       # fc_b
        ],
        out_specs=pl.BlockSpec((Bb, 1, C), lambda b: (b, 0, 0)),
        compiler_params=pltpu.CompilerParams(
            dimension_semantics=("parallel",)),
    )(x, params["w1"], params["b1"], params["w2"], params["b2"],
      params["weight_iBarh"], bias2d, params["weight_hh"],
      params["fc_w"], params["fc_b"])

    return jnp.transpose(out, (0, 2, 1))                             # (B, C, 1)


# -----------------------------------------------------------------------------
# Deterministic parameter init (xavier-uniform for >=2D, zeros for rnn biases)
# -----------------------------------------------------------------------------
def xavier_uniform(key, shape):
    limit = float(np.sqrt(6.0 / (shape[0] + shape[1])))
    return jax.random.uniform(key, shape, jnp.float32, -limit, limit)


# -----------------------------------------------------------------------------
# Pure numpy (float64) reference of the PyTorch forward, for verification.
# -----------------------------------------------------------------------------
def reference_forward(x_ncl, params):
    def sigmoid(v):
        return 1.0 / (1.0 + np.exp(-v))

    p = {k: np.asarray(v, np.float64) for k, v in params.items()}
    x = np.transpose(np.asarray(x_ncl, np.float64), (0, 2, 1))       # (B, S, F)
    B, S, F = x.shape
    H = p["weight_hh"].shape[0]
    R = p["w2"].shape[1]
    h = np.zeros((B, H))
    c = np.zeros((B, H))
    for t in range(S):
        Hx = x[:, :t + 1, :]                                         # (B, t+1, F)
        z = np.tanh(Hx @ p["w1"] + p["b1"])
        s = z @ p["w2"] + p["b2"]                                    # (B, t+1, R)
        s = s - s.max(axis=1, keepdims=True)
        e = np.exp(s)
        a = e / e.sum(axis=1, keepdims=True)                         # softmax over time
        M = (np.transpose(a, (0, 2, 1)) @ Hx).sum(axis=1) / R        # (B, F)
        gates = M @ p["weight_iBarh"] + h @ p["weight_hh"] + p["bias"]
        i_t = sigmoid(gates[:, :H])
        f_t = sigmoid(gates[:, H:2 * H])
        g_t = np.tanh(gates[:, 2 * H:3 * H])
        o_t = sigmoid(gates[:, 3 * H:])
        c = f_t * c + i_t * g_t
        h = o_t * np.tanh(c)
    out = h @ p["fc_w"] + p["fc_b"]
    return out[:, :, None]


if __name__ == "__main__":
    # shapes: batch=2, ch_in=4, seq=8, hidden=32, num_classes=5, r=4, d_a=8
    B, CH_IN, SEQ = 2, 4, 8
    HIDDEN, NUM_CLASSES, R, D_A = 32, 5, 4, 8

    key = jax.random.PRNGKey(0)
    keys = jax.random.split(key, 7)
    fc_bound = 1.0 / np.sqrt(HIDDEN)
    params = {
        # attention MLP (stored pre-transposed: x @ W)
        "w1": xavier_uniform(keys[0], (CH_IN, D_A)),
        "b1": jnp.zeros((1, D_A), jnp.float32),
        "w2": xavier_uniform(keys[1], (D_A, R)),
        "b2": jnp.zeros((1, R), jnp.float32),
        # LSTM gate weights (fused 4H = 128 lane-dense layout)
        "weight_iBarh": xavier_uniform(keys[2], (CH_IN, 4 * HIDDEN)),
        "weight_hh": xavier_uniform(keys[3], (HIDDEN, 4 * HIDDEN)),
        "bias": jnp.zeros((4 * HIDDEN,), jnp.float32),
        # final classifier
        "fc_w": jax.random.uniform(keys[4], (HIDDEN, NUM_CLASSES),
                                   jnp.float32, -fc_bound, fc_bound),
        "fc_b": jax.random.uniform(keys[5], (1, NUM_CLASSES),
                                   jnp.float32, -fc_bound, fc_bound),
    }

    x = jax.random.normal(keys[6], (B, CH_IN, SEQ), jnp.float32)
    ref = reference_forward(x, params)

    # Default path: single program on v5e/v6e, batch split across both
    # TensorCores on v7x (auto-detected).
    out = jax.block_until_ready(lstm_with_input_cell_attention(x, params))
    assert out.shape == (B, NUM_CLASSES, 1)
    np.testing.assert_allclose(np.asarray(out), ref, rtol=5e-3, atol=5e-3)

    # Explicitly exercise the batch-split (v7x) grid path as well so it is
    # verified regardless of which chip this runs on.
    out2 = jax.block_until_ready(
        lstm_with_input_cell_attention(x, params, batch_blocks=2))
    np.testing.assert_allclose(np.asarray(out2), ref, rtol=5e-3, atol=5e-3)

    print("KERNEL_OK")
</pallas_src>

<mosaic_0001>
module attributes {stable_mosaic.version = 11 : i64} {
  func.func @lstm_cell_attention_kernel(%arg0: i32, %arg1: memref<2x8x4xf32, #tpu.memory_space<vmem>>, %arg2: memref<4x8xf32, #tpu.memory_space<vmem>>, %arg3: memref<1x8xf32, #tpu.memory_space<vmem>>, %arg4: memref<8x4xf32, #tpu.memory_space<vmem>>, %arg5: memref<1x4xf32, #tpu.memory_space<vmem>>, %arg6: memref<4x128xf32, #tpu.memory_space<vmem>>, %arg7: memref<1x128xf32, #tpu.memory_space<vmem>>, %arg8: memref<32x128xf32, #tpu.memory_space<vmem>>, %arg9: memref<32x5xf32, #tpu.memory_space<vmem>>, %arg10: memref<1x5xf32, #tpu.memory_space<vmem>>, %arg11: memref<2x1x5xf32, #tpu.memory_space<vmem>>) attributes {dimension_semantics = [#tpu.dimension_semantics<parallel>], iteration_bounds = array<i64: 1>, scalar_prefetch = 0 : i64, scratch_operands = 0 : i64, tpu.core_type = #tpu.core_type<tc>, window_params = [{transform_indices = @transform_0, window_bounds = array<i64: 2, 8, 4>}, {pipeline_mode = #tpu.pipeline_mode<synchronous>, transform_indices = @transform_1, window_bounds = array<i64: 4, 8>}, {pipeline_mode = #tpu.pipeline_mode<synchronous>, transform_indices = @transform_2, window_bounds = array<i64: 1, 8>}, {pipeline_mode = #tpu.pipeline_mode<synchronous>, transform_indices = @transform_3, window_bounds = array<i64: 8, 4>}, {pipeline_mode = #tpu.pipeline_mode<synchronous>, transform_indices = @transform_4, window_bounds = array<i64: 1, 4>}, {pipeline_mode = #tpu.pipeline_mode<synchronous>, transform_indices = @transform_5, window_bounds = array<i64: 4, 128>}, {pipeline_mode = #tpu.pipeline_mode<synchronous>, transform_indices = @transform_6, window_bounds = array<i64: 1, 128>}, {pipeline_mode = #tpu.pipeline_mode<synchronous>, transform_indices = @transform_7, window_bounds = array<i64: 32, 128>}, {pipeline_mode = #tpu.pipeline_mode<synchronous>, transform_indices = @transform_8, window_bounds = array<i64: 32, 5>}, {pipeline_mode = #tpu.pipeline_mode<synchronous>, transform_indices = @transform_9, window_bounds = array<i64: 1, 5>}, {transform_indices = @transform_10, window_bounds = array<i64: 2, 1, 5>}]} {
    %c0 = arith.constant 0 : index
    %c0_0 = arith.constant 0 : index
    %c0_1 = arith.constant 0 : index
    %0 = vector.load %arg1[%c0, %c0_0, %c0_1] : memref<2x8x4xf32, #tpu.memory_space<vmem>>, vector<2x8x4xf32>
    %1 = vector.shape_cast %0 : vector<2x8x4xf32> to vector<16x4xf32>
    %c0_2 = arith.constant 0 : index
    %c0_3 = arith.constant 0 : index
    %2 = vector.load %arg2[%c0_2, %c0_3] : memref<4x8xf32, #tpu.memory_space<vmem>>, vector<4x8xf32>
    %cst = arith.constant dense<0.000000e+00> : vector<16x8xf32>
    %3 = tpu.matmul %1, %2, %cst {dimension_numbers = #tpu.dot_dimension_numbers<[1], [0], [0], [1], [0, 0, 1, 1], [], []>} : vector<16x4xf32>, vector<4x8xf32>, vector<16x8xf32> -> vector<16x8xf32>
    %c0_4 = arith.constant 0 : index
    %c0_5 = arith.constant 0 : index
    %4 = vector.load %arg3[%c0_4, %c0_5] : memref<1x8xf32, #tpu.memory_space<vmem>>, vector<1x8xf32>
    %5 = vector.broadcast %4 : vector<1x8xf32> to vector<16x8xf32>
    %6 = arith.addf %3, %5 : vector<16x8xf32>
    %7 = math.tanh %6 : vector<16x8xf32>
    %c0_6 = arith.constant 0 : index
    %c0_7 = arith.constant 0 : index
    %8 = vector.load %arg4[%c0_6, %c0_7] : memref<8x4xf32, #tpu.memory_space<vmem>>, vector<8x4xf32>
    %cst_8 = arith.constant dense<0.000000e+00> : vector<16x4xf32>
    %9 = tpu.matmul %7, %8, %cst_8 {dimension_numbers = #tpu.dot_dimension_numbers<[1], [0], [0], [1], [0, 0, 1, 1], [], []>} : vector<16x8xf32>, vector<8x4xf32>, vector<16x4xf32> -> vector<16x4xf32>
    %c0_9 = arith.constant 0 : index
    %c0_10 = arith.constant 0 : index
    %10 = vector.load %arg5[%c0_9, %c0_10] : memref<1x4xf32, #tpu.memory_space<vmem>>, vector<1x4xf32>
    %11 = vector.broadcast %10 : vector<1x4xf32> to vector<16x4xf32>
    %12 = arith.addf %9, %11 : vector<16x4xf32>
    %13 = vector.shape_cast %12 : vector<16x4xf32> to vector<2x8x4xf32>
    %cst_11 = arith.constant dense<0xFF800000> : vector<2x4xf32>
    %14 = vector.multi_reduction <maximumf>, %13, %cst_11 [1] : vector<2x8x4xf32> to vector<2x4xf32>
    %15 = vector.shape_cast %14 : vector<2x4xf32> to vector<2x1x4xf32>
    %16 = vector.broadcast %15 : vector<2x1x4xf32> to vector<2x8x4xf32>
    %17 = arith.subf %13, %16 : vector<2x8x4xf32>
    %18 = math.exp %17 : vector<2x8x4xf32>
    %19 = tpu.iota {dimensions = array<i32: 0>} : vector<8x8xi32>
    %20 = tpu.iota {dimensions = array<i32: 1>} : vector<8x8xi32>
    %21 = arith.cmpi sle, %20, %19 : vector<8x8xi32>
    %22 = arith.extui %21 : vector<8x8xi1> to vector<8x8xi32>
    %23 = arith.sitofp %22 : vector<8x8xi32> to vector<8x8xf32>
    %24 = vector.shape_cast %23 : vector<8x8xf32> to vector<1x8x8xf32>
    %25 = vector.shape_cast %24 : vector<1x8x8xf32> to vector<1x8x8xf32>
    %26 = vector.broadcast %25 : vector<1x8x8xf32> to vector<2x8x8xf32>
    "tpu.trace_start"() <{level = 10 : i32, message = "bts,bsj->btj"}> : () -> ()
    %cst_12 = arith.constant dense<0.000000e+00> : vector<2x8x4xf32>
    %27 = tpu.matmul %26, %18, %cst_12 {dimension_numbers = #tpu.dot_dimension_numbers<[2], [1], [1], [2], [0, 0, 0, 1, 1, 2], [0], [0]>} : vector<2x8x8xf32>, vector<2x8x4xf32>, vector<2x8x4xf32> -> vector<2x8x4xf32>
    "tpu.trace_stop"() : () -> ()
    %cst_13 = arith.constant 1.000000e-30 : f32
    %28 = vector.broadcast %cst_13 : f32 to vector<2x8x4xf32>
    %29 = arith.addf %27, %28 : vector<2x8x4xf32>
    %30 = tpu.reciprocal %29 {approx = true} : vector<2x8x4xf32> -> vector<2x8x4xf32>
    %cst_14 = arith.constant 2.500000e-01 : f32
    %31 = vector.broadcast %cst_14 : f32 to vector<2x8x4xf32>
    %32 = arith.mulf %30, %31 : vector<2x8x4xf32>
    "tpu.trace_start"() <{level = 10 : i32, message = "btj,bsj->bts"}> : () -> ()
    %cst_15 = arith.constant dense<0.000000e+00> : vector<2x8x8xf32>
    %33 = tpu.matmul %32, %18, %cst_15 {dimension_numbers = #tpu.dot_dimension_numbers<[2], [2], [1], [1], [0, 0, 0, 1, 1, 1], [0], [0]>} : vector<2x8x4xf32>, vector<2x8x4xf32>, vector<2x8x8xf32> -> vector<2x8x8xf32>
    "tpu.trace_stop"() : () -> ()
    %34 = vector.shape_cast %23 : vector<8x8xf32> to vector<1x8x8xf32>
    %35 = vector.broadcast %34 : vector<1x8x8xf32> to vector<2x8x8xf32>
    %36 = arith.mulf %33, %35 : vector<2x8x8xf32>
    "tpu.trace_start"() <{level = 10 : i32, message = "bts,bsf->btf"}> : () -> ()
    %cst_16 = arith.constant dense<0.000000e+00> : vector<2x8x4xf32>
    %37 = tpu.matmul %36, %0, %cst_16 {dimension_numbers = #tpu.dot_dimension_numbers<[2], [1], [1], [2], [0, 0, 0, 1, 1, 2], [0], [0]>} : vector<2x8x8xf32>, vector<2x8x4xf32>, vector<2x8x4xf32> -> vector<2x8x4xf32>
    "tpu.trace_stop"() : () -> ()
    %38 = vector.shape_cast %37 : vector<2x8x4xf32> to vector<16x4xf32>
    %c0_17 = arith.constant 0 : index
    %c0_18 = arith.constant 0 : index
    %39 = vector.load %arg6[%c0_17, %c0_18] : memref<4x128xf32, #tpu.memory_space<vmem>>, vector<4x128xf32>
    %cst_19 = arith.constant dense<0.000000e+00> : vector<16x128xf32>
    %40 = tpu.matmul %38, %39, %cst_19 {dimension_numbers = #tpu.dot_dimension_numbers<[1], [0], [0], [1], [0, 0, 1, 1], [], []>} : vector<16x4xf32>, vector<4x128xf32>, vector<16x128xf32> -> vector<16x128xf32>
    %c0_20 = arith.constant 0 : index
    %c0_21 = arith.constant 0 : index
    %41 = vector.load %arg7[%c0_20, %c0_21] : memref<1x128xf32, #tpu.memory_space<vmem>>, vector<1x128xf32>
    %42 = vector.broadcast %41 : vector<1x128xf32> to vector<16x128xf32>
    %43 = arith.addf %40, %42 : vector<16x128xf32>
    %44 = vector.shape_cast %43 : vector<16x128xf32> to vector<2x8x128xf32>
    %c0_22 = arith.constant 0 : index
    %c0_23 = arith.constant 0 : index
    %45 = vector.load %arg8[%c0_22, %c0_23] : memref<32x128xf32, #tpu.memory_space<vmem>>, vector<32x128xf32>
    %cst_24 = arith.constant 0.000000e+00 : f32
    %46 = vector.broadcast %cst_24 : f32 to vector<2x32xf32>
    %47 = vector.extract_strided_slice %44 {offsets = [0, 0, 0], sizes = [2, 1, 128], strides = [1, 1, 1]} : vector<2x8x128xf32> to vector<2x1x128xf32>
    %48 = vector.shape_cast %47 : vector<2x1x128xf32> to vector<2x128xf32>
    %49 = arith.negf %48 : vector<2x128xf32>
    %50 = math.exp %49 : vector<2x128xf32>
    %cst_25 = arith.constant 1.000000e+00 : f32
    %51 = vector.broadcast %cst_25 : f32 to vector<2x128xf32>
    %52 = arith.addf %51, %50 : vector<2x128xf32>
    %53 = arith.divf %51, %52 : vector<2x128xf32>
    %54 = math.tanh %48 : vector<2x128xf32>
    %55 = vector.extract_strided_slice %53 {offsets = [0, 0], sizes = [2, 32], strides = [1, 1]} : vector<2x128xf32> to vector<2x32xf32>
    %56 = vector.extract_strided_slice %53 {offsets = [0, 32], sizes = [2, 32], strides = [1, 1]} : vector<2x128xf32> to vector<2x32xf32>
    %57 = vector.extract_strided_slice %54 {offsets = [0, 64], sizes = [2, 32], strides = [1, 1]} : vector<2x128xf32> to vector<2x32xf32>
    %58 = vector.extract_strided_slice %53 {offsets = [0, 96], sizes = [2, 32], strides = [1, 1]} : vector<2x128xf32> to vector<2x32xf32>
    %59 = arith.mulf %56, %46 : vector<2x32xf32>
    %60 = arith.mulf %55, %57 : vector<2x32xf32>
    %61 = arith.addf %59, %60 : vector<2x32xf32>
    %62 = math.tanh %61 : vector<2x32xf32>
    %63 = arith.mulf %58, %62 : vector<2x32xf32>
    %64 = vector.extract_strided_slice %44 {offsets = [0, 1, 0], sizes = [2, 1, 128], strides = [1, 1, 1]} : vector<2x8x128xf32> to vector<2x1x128xf32>
    %65 = vector.shape_cast %64 : vector<2x1x128xf32> to vector<2x128xf32>
    %cst_26 = arith.constant dense<0.000000e+00> : vector<2x128xf32>
    %66 = tpu.matmul %63, %45, %cst_26 {dimension_numbers = #tpu.dot_dimension_numbers<[1], [0], [0], [1], [0, 0, 1, 1], [], []>} : vector<2x32xf32>, vector<32x128xf32>, vector<2x128xf32> -> vector<2x128xf32>
    %67 = arith.addf %65, %66 : vector<2x128xf32>
    %68 = arith.negf %67 : vector<2x128xf32>
    %69 = math.exp %68 : vector<2x128xf32>
    %cst_27 = arith.constant 1.000000e+00 : f32
    %70 = vector.broadcast %cst_27 : f32 to vector<2x128xf32>
    %71 = arith.addf %70, %69 : vector<2x128xf32>
    %72 = arith.divf %70, %71 : vector<2x128xf32>
    %73 = math.tanh %67 : vector<2x128xf32>
    %74 = vector.extract_strided_slice %72 {offsets = [0, 0], sizes = [2, 32], strides = [1, 1]} : vector<2x128xf32> to vector<2x32xf32>
    %75 = vector.extract_strided_slice %72 {offsets = [0, 32], sizes = [2, 32], strides = [1, 1]} : vector<2x128xf32> to vector<2x32xf32>
    %76 = vector.extract_strided_slice %73 {offsets = [0, 64], sizes = [2, 32], strides = [1, 1]} : vector<2x128xf32> to vector<2x32xf32>
    %77 = vector.extract_strided_slice %72 {offsets = [0, 96], sizes = [2, 32], strides = [1, 1]} : vector<2x128xf32> to vector<2x32xf32>
    %78 = arith.mulf %75, %61 : vector<2x32xf32>
    %79 = arith.mulf %74, %76 : vector<2x32xf32>
    %80 = arith.addf %78, %79 : vector<2x32xf32>
    %81 = math.tanh %80 : vector<2x32xf32>
    %82 = arith.mulf %77, %81 : vector<2x32xf32>
    %83 = vector.extract_strided_slice %44 {offsets = [0, 2, 0], sizes = [2, 1, 128], strides = [1, 1, 1]} : vector<2x8x128xf32> to vector<2x1x128xf32>
    %84 = vector.shape_cast %83 : vector<2x1x128xf32> to vector<2x128xf32>
    %cst_28 = arith.constant dense<0.000000e+00> : vector<2x128xf32>
    %85 = tpu.matmul %82, %45, %cst_28 {dimension_numbers = #tpu.dot_dimension_numbers<[1], [0], [0], [1], [0, 0, 1, 1], [], []>} : vector<2x32xf32>, vector<32x128xf32>, vector<2x128xf32> -> vector<2x128xf32>
    %86 = arith.addf %84, %85 : vector<2x128xf32>
    %87 = arith.negf %86 : vector<2x128xf32>
    %88 = math.exp %87 : vector<2x128xf32>
    %cst_29 = arith.constant 1.000000e+00 : f32
    %89 = vector.broadcast %cst_29 : f32 to vector<2x128xf32>
    %90 = arith.addf %89, %88 : vector<2x128xf32>
    %91 = arith.divf %89, %90 : vector<2x128xf32>
    %92 = math.tanh %86 : vector<2x128xf32>
    %93 = vector.extract_strided_slice %91 {offsets = [0, 0], sizes = [2, 32], strides = [1, 1]} : vector<2x128xf32> to vector<2x32xf32>
    %94 = vector.extract_strided_slice %91 {offsets = [0, 32], sizes = [2, 32], strides = [1, 1]} : vector<2x128xf32> to vector<2x32xf32>
    %95 = vector.extract_strided_slice %92 {offsets = [0, 64], sizes = [2, 32], strides = [1, 1]} : vector<2x128xf32> to vector<2x32xf32>
    %96 = vector.extract_strided_slice %91 {offsets = [0, 96], sizes = [2, 32], strides = [1, 1]} : vector<2x128xf32> to vector<2x32xf32>
    %97 = arith.mulf %94, %80 : vector<2x32xf32>
    %98 = arith.mulf %93, %95 : vector<2x32xf32>
    %99 = arith.addf %97, %98 : vector<2x32xf32>
    %100 = math.tanh %99 : vector<2x32xf32>
    %101 = arith.mulf %96, %100 : vector<2x32xf32>
    %102 = vector.extract_strided_slice %44 {offsets = [0, 3, 0], sizes = [2, 1, 128], strides = [1, 1, 1]} : vector<2x8x128xf32> to vector<2x1x128xf32>
    %103 = vector.shape_cast %102 : vector<2x1x128xf32> to vector<2x128xf32>
    %cst_30 = arith.constant dense<0.000000e+00> : vector<2x128xf32>
    %104 = tpu.matmul %101, %45, %cst_30 {dimension_numbers = #tpu.dot_dimension_numbers<[1], [0], [0], [1], [0, 0, 1, 1], [], []>} : vector<2x32xf32>, vector<32x128xf32>, vector<2x128xf32> -> vector<2x128xf32>
    %105 = arith.addf %103, %104 : vector<2x128xf32>
    %106 = arith.negf %105 : vector<2x128xf32>
    %107 = math.exp %106 : vector<2x128xf32>
    %cst_31 = arith.constant 1.000000e+00 : f32
    %108 = vector.broadcast %cst_31 : f32 to vector<2x128xf32>
    %109 = arith.addf %108, %107 : vector<2x128xf32>
    %110 = arith.divf %108, %109 : vector<2x128xf32>
    %111 = math.tanh %105 : vector<2x128xf32>
    %112 = vector.extract_strided_slice %110 {offsets = [0, 0], sizes = [2, 32], strides = [1, 1]} : vector<2x128xf32> to vector<2x32xf32>
    %113 = vector.extract_strided_slice %110 {offsets = [0, 32], sizes = [2, 32], strides = [1, 1]} : vector<2x128xf32> to vector<2x32xf32>
    %114 = vector.extract_strided_slice %111 {offsets = [0, 64], sizes = [2, 32], strides = [1, 1]} : vector<2x128xf32> to vector<2x32xf32>
    %115 = vector.extract_strided_slice %110 {offsets = [0, 96], sizes = [2, 32], strides = [1, 1]} : vector<2x128xf32> to vector<2x32xf32>
    %116 = arith.mulf %113, %99 : vector<2x32xf32>
    %117 = arith.mulf %112, %114 : vector<2x32xf32>
    %118 = arith.addf %116, %117 : vector<2x32xf32>
    %119 = math.tanh %118 : vector<2x32xf32>
    %120 = arith.mulf %115, %119 : vector<2x32xf32>
    %121 = vector.extract_strided_slice %44 {offsets = [0, 4, 0], sizes = [2, 1, 128], strides = [1, 1, 1]} : vector<2x8x128xf32> to vector<2x1x128xf32>
    %122 = vector.shape_cast %121 : vector<2x1x128xf32> to vector<2x128xf32>
    %cst_32 = arith.constant dense<0.000000e+00> : vector<2x128xf32>
    %123 = tpu.matmul %120, %45, %cst_32 {dimension_numbers = #tpu.dot_dimension_numbers<[1], [0], [0], [1], [0, 0, 1, 1], [], []>} : vector<2x32xf32>, vector<32x128xf32>, vector<2x128xf32> -> vector<2x128xf32>
    %124 = arith.addf %122, %123 : vector<2x128xf32>
    %125 = arith.negf %124 : vector<2x128xf32>
    %126 = math.exp %125 : vector<2x128xf32>
    %cst_33 = arith.constant 1.000000e+00 : f32
    %127 = vector.broadcast %cst_33 : f32 to vector<2x128xf32>
    %128 = arith.addf %127, %126 : vector<2x128xf32>
    %129 = arith.divf %127, %128 : vector<2x128xf32>
    %130 = math.tanh %124 : vector<2x128xf32>
    %131 = vector.extract_strided_slice %129 {offsets = [0, 0], sizes = [2, 32], strides = [1, 1]} : vector<2x128xf32> to vector<2x32xf32>
    %132 = vector.extract_strided_slice %129 {offsets = [0, 32], sizes = [2, 32], strides = [1, 1]} : vector<2x128xf32> to vector<2x32xf32>
    %133 = vector.extract_strided_slice %130 {offsets = [0, 64], sizes = [2, 32], strides = [1, 1]} : vector<2x128xf32> to vector<2x32xf32>
    %134 = vector.extract_strided_slice %129 {offsets = [0, 96], sizes = [2, 32], strides = [1, 1]} : vector<2x128xf32> to vector<2x32xf32>
    %135 = arith.mulf %132, %118 : vector<2x32xf32>
    %136 = arith.mulf %131, %133 : vector<2x32xf32>
    %137 = arith.addf %135, %136 : vector<2x32xf32>
    %138 = math.tanh %137 : vector<2x32xf32>
    %139 = arith.mulf %134, %138 : vector<2x32xf32>
    %140 = vector.extract_strided_slice %44 {offsets = [0, 5, 0], sizes = [2, 1, 128], strides = [1, 1, 1]} : vector<2x8x128xf32> to vector<2x1x128xf32>
    %141 = vector.shape_cast %140 : vector<2x1x128xf32> to vector<2x128xf32>
    %cst_34 = arith.constant dense<0.000000e+00> : vector<2x128xf32>
    %142 = tpu.matmul %139, %45, %cst_34 {dimension_numbers = #tpu.dot_dimension_numbers<[1], [0], [0], [1], [0, 0, 1, 1], [], []>} : vector<2x32xf32>, vector<32x128xf32>, vector<2x128xf32> -> vector<2x128xf32>
    %143 = arith.addf %141, %142 : vector<2x128xf32>
    %144 = arith.negf %143 : vector<2x128xf32>
    %145 = math.exp %144 : vector<2x128xf32>
    %cst_35 = arith.constant 1.000000e+00 : f32
    %146 = vector.broadcast %cst_35 : f32 to vector<2x128xf32>
    %147 = arith.addf %146, %145 : vector<2x128xf32>
    %148 = arith.divf %146, %147 : vector<2x128xf32>
    %149 = math.tanh %143 : vector<2x128xf32>
    %150 = vector.extract_strided_slice %148 {offsets = [0, 0], sizes = [2, 32], strides = [1, 1]} : vector<2x128xf32> to vector<2x32xf32>
    %151 = vector.extract_strided_slice %148 {offsets = [0, 32], sizes = [2, 32], strides = [1, 1]} : vector<2x128xf32> to vector<2x32xf32>
    %152 = vector.extract_strided_slice %149 {offsets = [0, 64], sizes = [2, 32], strides = [1, 1]} : vector<2x128xf32> to vector<2x32xf32>
    %153 = vector.extract_strided_slice %148 {offsets = [0, 96], sizes = [2, 32], strides = [1, 1]} : vector<2x128xf32> to vector<2x32xf32>
    %154 = arith.mulf %151, %137 : vector<2x32xf32>
    %155 = arith.mulf %150, %152 : vector<2x32xf32>
    %156 = arith.addf %154, %155 : vector<2x32xf32>
    %157 = math.tanh %156 : vector<2x32xf32>
    %158 = arith.mulf %153, %157 : vector<2x32xf32>
    %159 = vector.extract_strided_slice %44 {offsets = [0, 6, 0], sizes = [2, 1, 128], strides = [1, 1, 1]} : vector<2x8x128xf32> to vector<2x1x128xf32>
    %160 = vector.shape_cast %159 : vector<2x1x128xf32> to vector<2x128xf32>
    %cst_36 = arith.constant dense<0.000000e+00> : vector<2x128xf32>
    %161 = tpu.matmul %158, %45, %cst_36 {dimension_numbers = #tpu.dot_dimension_numbers<[1], [0], [0], [1], [0, 0, 1, 1], [], []>} : vector<2x32xf32>, vector<32x128xf32>, vector<2x128xf32> -> vector<2x128xf32>
    %162 = arith.addf %160, %161 : vector<2x128xf32>
    %163 = arith.negf %162 : vector<2x128xf32>
    %164 = math.exp %163 : vector<2x128xf32>
    %cst_37 = arith.constant 1.000000e+00 : f32
    %165 = vector.broadcast %cst_37 : f32 to vector<2x128xf32>
    %166 = arith.addf %165, %164 : vector<2x128xf32>
    %167 = arith.divf %165, %166 : vector<2x128xf32>
    %168 = math.tanh %162 : vector<2x128xf32>
    %169 = vector.extract_strided_slice %167 {offsets = [0, 0], sizes = [2, 32], strides = [1, 1]} : vector<2x128xf32> to vector<2x32xf32>
    %170 = vector.extract_strided_slice %167 {offsets = [0, 32], sizes = [2, 32], strides = [1, 1]} : vector<2x128xf32> to vector<2x32xf32>
    %171 = vector.extract_strided_slice %168 {offsets = [0, 64], sizes = [2, 32], strides = [1, 1]} : vector<2x128xf32> to vector<2x32xf32>
    %172 = vector.extract_strided_slice %167 {offsets = [0, 96], sizes = [2, 32], strides = [1, 1]} : vector<2x128xf32> to vector<2x32xf32>
    %173 = arith.mulf %170, %156 : vector<2x32xf32>
    %174 = arith.mulf %169, %171 : vector<2x32xf32>
    %175 = arith.addf %173, %174 : vector<2x32xf32>
    %176 = math.tanh %175 : vector<2x32xf32>
    %177 = arith.mulf %172, %176 : vector<2x32xf32>
    %178 = vector.extract_strided_slice %44 {offsets = [0, 7, 0], sizes = [2, 1, 128], strides = [1, 1, 1]} : vector<2x8x128xf32> to vector<2x1x128xf32>
    %179 = vector.shape_cast %178 : vector<2x1x128xf32> to vector<2x128xf32>
    %cst_38 = arith.constant dense<0.000000e+00> : vector<2x128xf32>
    %180 = tpu.matmul %177, %45, %cst_38 {dimension_numbers = #tpu.dot_dimension_numbers<[1], [0], [0], [1], [0, 0, 1, 1], [], []>} : vector<2x32xf32>, vector<32x128xf32>, vector<2x128xf32> -> vector<2x128xf32>
    %181 = arith.addf %179, %180 : vector<2x128xf32>
    %182 = arith.negf %181 : vector<2x128xf32>
    %183 = math.exp %182 : vector<2x128xf32>
    %cst_39 = arith.constant 1.000000e+00 : f32
    %184 = vector.broadcast %cst_39 : f32 to vector<2x128xf32>
    %185 = arith.addf %184, %183 : vector<2x128xf32>
    %186 = arith.divf %184, %185 : vector<2x128xf32>
    %187 = math.tanh %181 : vector<2x128xf32>
    %188 = vector.extract_strided_slice %186 {offsets = [0, 0], sizes = [2, 32], strides = [1, 1]} : vector<2x128xf32> to vector<2x32xf32>
    %189 = vector.extract_strided_slice %186 {offsets = [0, 32], sizes = [2, 32], strides = [1, 1]} : vector<2x128xf32> to vector<2x32xf32>
    %190 = vector.extract_strided_slice %187 {offsets = [0, 64], sizes = [2, 32], strides = [1, 1]} : vector<2x128xf32> to vector<2x32xf32>
    %191 = vector.extract_strided_slice %186 {offsets = [0, 96], sizes = [2, 32], strides = [1, 1]} : vector<2x128xf32> to vector<2x32xf32>
    %192 = arith.mulf %189, %175 : vector<2x32xf32>
    %193 = arith.mulf %188, %190 : vector<2x32xf32>
    %194 = arith.addf %192, %193 : vector<2x32xf32>
    %195 = math.tanh %194 : vector<2x32xf32>
    %196 = arith.mulf %191, %195 : vector<2x32xf32>
    %c0_40 = arith.constant 0 : index
    %c0_41 = arith.constant 0 : index
    %197 = vector.load %arg9[%c0_40, %c0_41] : memref<32x5xf32, #tpu.memory_space<vmem>>, vector<32x5xf32>
    %cst_42 = arith.constant dense<0.000000e+00> : vector<2x5xf32>
    %198 = tpu.matmul %196, %197, %cst_42 {dimension_numbers = #tpu.dot_dimension_numbers<[1], [0], [0], [1], [0, 0, 1, 1], [], []>} : vector<2x32xf32>, vector<32x5xf32>, vector<2x5xf32> -> vector<2x5xf32>
    %c0_43 = arith.constant 0 : index
    %c0_44 = arith.constant 0 : index
    %199 = vector.load %arg10[%c0_43, %c0_44] : memref<1x5xf32, #tpu.memory_space<vmem>>, vector<1x5xf32>
    %200 = vector.broadcast %199 : vector<1x5xf32> to vector<2x5xf32>
    %201 = arith.addf %198, %200 : vector<2x5xf32>
    %202 = vector.shape_cast %201 : vector<2x5xf32> to vector<2x1x5xf32>
    %c0_45 = arith.constant 0 : index
    %c0_46 = arith.constant 0 : index
    %c0_47 = arith.constant 0 : index
    %203 = vector.load %arg11[%c0_45, %c0_46, %c0_47] : memref<2x1x5xf32, #tpu.memory_space<vmem>>, vector<2x1x5xf32>
    tpu.vector_store %arg11[%c0_45, %c0_46, %c0_47], %202 {strides = array<i32>} : memref<2x1x5xf32, #tpu.memory_space<vmem>>, vector<2x1x5xf32>,
    return
  }
  func.func @transform_0(%arg0: i32) -> (i32, i32, i32) {
    %c0_i32 = arith.constant 0 : i32
    %c0_i32_0 = arith.constant 0 : i32
    %c0_i32_1 = arith.constant 0 : i32
    return %arg0, %c0_i32, %c0_i32_0 : i32, i32, i32
  }
  func.func @transform_1(%arg0: i32) -> (i32, i32) {
    %c0_i32 = arith.constant 0 : i32
    %c0_i32_0 = arith.constant 0 : i32
    %c0_i32_1 = arith.constant 0 : i32
    return %c0_i32, %c0_i32_0 : i32, i32
  }
  func.func @transform_2(%arg0: i32) -> (i32, i32) {
    %c0_i32 = arith.constant 0 : i32
    %c0_i32_0 = arith.constant 0 : i32
    %c0_i32_1 = arith.constant 0 : i32
    return %c0_i32, %c0_i32_0 : i32, i32
  }
  func.func @transform_3(%arg0: i32) -> (i32, i32) {
    %c0_i32 = arith.constant 0 : i32
    %c0_i32_0 = arith.constant 0 : i32
    %c0_i32_1 = arith.constant 0 : i32
    return %c0_i32, %c0_i32_0 : i32, i32
  }
  func.func @transform_4(%arg0: i32) -> (i32, i32) {
    %c0_i32 = arith.constant 0 : i32
    %c0_i32_0 = arith.constant 0 : i32
    %c0_i32_1 = arith.constant 0 : i32
    return %c0_i32, %c0_i32_0 : i32, i32
  }
  func.func @transform_5(%arg0: i32) -> (i32, i32) {
    %c0_i32 = arith.constant 0 : i32
    %c0_i32_0 = arith.constant 0 : i32
    %c0_i32_1 = arith.constant 0 : i32
    return %c0_i32, %c0_i32_0 : i32, i32
  }
  func.func @transform_6(%arg0: i32) -> (i32, i32) {
    %c0_i32 = arith.constant 0 : i32
    %c0_i32_0 = arith.constant 0 : i32
    %c0_i32_1 = arith.constant 0 : i32
    return %c0_i32, %c0_i32_0 : i32, i32
  }
  func.func @transform_7(%arg0: i32) -> (i32, i32) {
    %c0_i32 = arith.constant 0 : i32
    %c0_i32_0 = arith.constant 0 : i32
    %c0_i32_1 = arith.constant 0 : i32
    return %c0_i32, %c0_i32_0 : i32, i32
  }
  func.func @transform_8(%arg0: i32) -> (i32, i32) {
    %c0_i32 = arith.constant 0 : i32
    %c0_i32_0 = arith.constant 0 : i32
    %c0_i32_1 = arith.constant 0 : i32
    return %c0_i32, %c0_i32_0 : i32, i32
  }
  func.func @transform_9(%arg0: i32) -> (i32, i32) {
    %c0_i32 = arith.constant 0 : i32
    %c0_i32_0 = arith.constant 0 : i32
    %c0_i32_1 = arith.constant 0 : i32
    return %c0_i32, %c0_i32_0 : i32, i32
  }
  func.func @transform_10(%arg0: i32) -> (i32, i32, i32) {
    %c0_i32 = arith.constant 0 : i32
    %c0_i32_0 = arith.constant 0 : i32
    %c0_i32_1 = arith.constant 0 : i32
    return %arg0, %c0_i32, %c0_i32_0 : i32, i32, i32
  }
}

</mosaic_0001>

<llo_original>
// kernel: tpu_custom_call.1
$region0: #{tpu_custom_call.1}
  #allocation0 [shape = 'u32[]', space=smem, size = 0x4, offset = 0x4, fixed_abs, tag = 'smem constant byte address 0x4 - core index']
  #allocation1 [shape = 'u32[144,128]{1,0:T(1,128)}', space=vmem, size = 0x12000, scoped, tag = 'internal scratch']
  %s0 = inlined_call_operand.vmem [shape: f32[2,8,4], index: 0, kind: input, shape index: {}]
  %s1 = inlined_call_operand.vmem [shape: f32[4,8], index: 1, kind: input, shape index: {}]
  %s2 = inlined_call_operand.vmem [shape: f32[1,8], index: 2, kind: input, shape index: {}]
  %s3 = inlined_call_operand.vmem [shape: f32[8,4], index: 3, kind: input, shape index: {}]
  %s4 = inlined_call_operand.vmem [shape: f32[1,4], index: 4, kind: input, shape index: {}]
  %s5 = inlined_call_operand.vmem [shape: f32[4,128], index: 5, kind: input, shape index: {}]
  %s6 = inlined_call_operand.vmem [shape: f32[1,128], index: 6, kind: input, shape index: {}]
  %s7 = inlined_call_operand.vmem [shape: f32[32,128], index: 7, kind: input, shape index: {}]
  %s8 = inlined_call_operand.vmem [shape: f32[32,5], index: 8, kind: input, shape index: {}]
  %s9 = inlined_call_operand.vmem [shape: f32[1,5], index: 9, kind: input, shape index: {}]
  %s10 = inlined_call_operand.hbm [shape: f32[2,1,5], index: 10, kind: output, shape index: {}]
  %s11 = sld [smem:[#allocation0]]
  $region50: #{tpu_custom_call.1} parent=0
    _
  %s13 = ssub.s32 1, %s11
  %s14 = scalar_select 0, %s13, %s11
  $region1: #{tpu_custom_call.1} parent=0
    #allocation2 [shape = 'u8[1024]{0}', space=vmem, size = 0x400, scoped, tag = 'output window, operand 0, single buffered']
    #allocation3 [shape = 's32[1]{0}', space=sflag, size = 0x4, scoped, tag = 'scoped memory for tpu_custom_call.1']
    %15 = vsyncpa [#allocation3], 0
    // Predicated region
    $region2: #{tpu_custom_call.1} parent=1 // pred_check
      _
    $region3: #{tpu_custom_call.1} parent=1 // pred_check_branch
      %17 = sbr.rel (0) target = $region5
    $region4: #{tpu_custom_call.1} parent=1 // pred_region
      _
    $region5: #{tpu_custom_call.1} parent=1 // pred_fallthru
      _
    // Predicated region
    $region6: #{tpu_custom_call.1} parent=1 // pred_check
      _
    $region7: #{tpu_custom_call.1} parent=1 // pred_check_branch
      %19 = sbr.rel (0) target = $region9
    $region8: #{tpu_custom_call.1} parent=1 // pred_region
      _
    $region9: #{tpu_custom_call.1} parent=1 // pred_fallthru
      _
    // Predicated region
    $region10: #{tpu_custom_call.1} parent=1 // pred_check
      _
    $region11: #{tpu_custom_call.1} parent=1 // pred_check_branch
      %21 = sbr.rel (0) target = $region13
    $region12: #{tpu_custom_call.1} parent=1 // pred_region
      _
    $region13: #{tpu_custom_call.1} parent=1 // pred_fallthru
      _
    // Predicated region
    $region14: #{tpu_custom_call.1} parent=1 // pred_check
      _
    $region15: #{tpu_custom_call.1} parent=1 // pred_check_branch
      %23 = sbr.rel (0) target = $region17
    $region16: #{tpu_custom_call.1} parent=1 // pred_region
      _
    $region17: #{tpu_custom_call.1} parent=1 // pred_fallthru
      _
    // Predicated region
    $region18: #{tpu_custom_call.1} parent=1 // pred_check
      _
    $region19: #{tpu_custom_call.1} parent=1 // pred_check_branch
      %25 = sbr.rel (0) target = $region21
    $region20: #{tpu_custom_call.1} parent=1 // pred_region
      _
    $region21: #{tpu_custom_call.1} parent=1 // pred_fallthru
      _
    // Predicated region
    $region22: #{tpu_custom_call.1} parent=1 // pred_check
      _
    $region23: #{tpu_custom_call.1} parent=1 // pred_check_branch
      %27 = sbr.rel (0) target = $region25
    $region24: #{tpu_custom_call.1} parent=1 // pred_region
      _
    $region25: #{tpu_custom_call.1} parent=1 // pred_fallthru
      _
    // Predicated region
    $region26: #{tpu_custom_call.1} parent=1 // pred_check
      _
    $region27: #{tpu_custom_call.1} parent=1 // pred_check_branch
      %29 = sbr.rel (0) target = $region29
    $region28: #{tpu_custom_call.1} parent=1 // pred_region
      _
    $region29: #{tpu_custom_call.1} parent=1 // pred_fallthru
      _
    // Predicated region
    $region30: #{tpu_custom_call.1} parent=1 // pred_check
      _
    $region31: #{tpu_custom_call.1} parent=1 // pred_check_branch
      %31 = sbr.rel (0) target = $region33
    $region32: #{tpu_custom_call.1} parent=1 // pred_region
      _
    $region33: #{tpu_custom_call.1} parent=1 // pred_fallthru
      _
    // Predicated region
    $region34: #{tpu_custom_call.1} parent=1 // pred_check
      _
    $region35: #{tpu_custom_call.1} parent=1 // pred_check_branch
      %33 = sbr.rel (0) target = $region37
    $region36: #{tpu_custom_call.1} parent=1 // pred_region
      _
    $region37: #{tpu_custom_call.1} parent=1 // pred_fallthru
      _
    // Predicated region
    $region38: #{tpu_custom_call.1} parent=1 // pred_check
      _
    $region39: #{tpu_custom_call.1} parent=1 // pred_check_branch
      %35 = sbr.rel (0) target = $region41
    $region40: #{tpu_custom_call.1} parent=1 // pred_region
      _
    $region41: #{tpu_custom_call.1} parent=1 // pred_fallthru
      _
    %v36 = vld [vmem:[%s0] sm:$0xff]
    %v37 = vld [vmem:[%s0 + $0x8] sm:$0xff]
    %v38 = vld [vmem:[%s1] sm:$0xf]
    %v39 = vld [vmem:[%s2] sm:$0x1]
    %v41 = vlaneseq
    %v42 = vshrl.u32 %v41, 7
    %v43 = vsub.s32 0, %v42
    %v44 = vrot.slane %v39, %v43
    %vm46 = vcmask 31744
    %v48 = vsel %vm46, %v36, 0
    %v51 = vsel %vm46, %v37, 0
    %vm53 = vcmask 1043456
    %v55 = vsel %vm53, %v38, 0
    %57 = vmatprep.subr.mxu0 0.0
    %58 = vmatpush1.msra.mxu0 %v55
    %59 = vmatprep.subr.mxu0 0.0
    %60 = vmatpush1.msra.mxu0 0.0
    %61 = vmatprep.subr.mxu0 0.0
    %62 = vmatpush1.msra.mxu0 0.0
    %63 = vmatprep.subr.mxu0 0.0
    %64 = vmatpush1.msra.mxu0 0.0
    %65 = vmatprep.subr.mxu0 0.0
    %66 = vmatpush1.msra.mxu0 0.0
    %67 = vmatprep.subr.mxu0 0.0
    %68 = vmatpush1.msra.mxu0 0.0
    %69 = vmatprep.subr.mxu0 0.0
    %70 = vmatpush1.msra.mxu0 0.0
    %71 = vmatprep.subr.mxu0 0.0
    %72 = vmatpush1.msra.mxu0 0.0
    %73 = vmatprep.subr.mxu0 0.0
    %74 = vmatpush1.msra.mxu0 0.0
    %75 = vmatprep.subr.mxu0 0.0
    %76 = vmatpush1.msra.mxu0 0.0
    %77 = vmatprep.subr.mxu0 0.0
    %78 = vmatpush1.msra.mxu0 0.0
    %79 = vmatprep.subr.mxu0 0.0
    %80 = vmatpush1.msra.mxu0 0.0
    %81 = vmatprep.subr.mxu0 0.0
    %82 = vmatpush1.msra.mxu0 0.0
    %83 = vmatprep.subr.mxu0 0.0
    %84 = vmatpush1.msra.mxu0 0.0
    %85 = vmatprep.subr.mxu0 0.0
    %86 = vmatpush1.msra.mxu0 0.0
    %87 = vmatprep.subr.mxu0 0.0
    %88 = vmatpush1.msra.mxu0 0.0
    %89 = vmatprep.subr.mxu0 0.0
    %90 = vmatpush1.msra.mxu0 0.0
    %91 = vmatprep.subr.mxu0 0.0
    %92 = vmatpush1.msra.mxu0 0.0
    %93 = vmatprep.subr.mxu0 0.0
    %94 = vmatpush1.msra.mxu0 0.0
    %95 = vmatprep.subr.mxu0 0.0
    %96 = vmatpush1.msra.mxu0 0.0
    %97 = vmatprep.subr.mxu0 0.0
    %98 = vmatpush1.msra.mxu0 0.0
    %99 = vmatprep.subr.mxu0 0.0
    %100 = vmatpush1.msra.mxu0 0.0
    %101 = vmatprep.subr.mxu0 0.0
    %102 = vmatpush1.msra.mxu0 0.0
    %103 = vmatprep.subr.mxu0 0.0
    %104 = vmatpush1.msra.mxu0 0.0
    %105 = vmatprep.subr.mxu0 0.0
    %106 = vmatpush1.msra.mxu0 0.0
    %107 = vmatprep.subr.mxu0 0.0
    %108 = vmatpush1.msra.mxu0 0.0
    %109 = vmatprep.subr.mxu0 0.0
    %110 = vmatpush1.msra.mxu0 0.0
    %111 = vmatprep.subr.mxu0 0.0
    %112 = vmatpush1.msra.mxu0 0.0
    %113 = vmatprep.subr.mxu0 0.0
    %114 = vmatpush1.msra.mxu0 0.0
    %115 = vmatprep.subr.mxu0 0.0
    %116 = vmatpush1.msra.mxu0 0.0
    %117 = vmatprep.subr.mxu0 0.0
    %118 = vmatpush1.msra.mxu0 0.0
    %119 = vmatprep.subr.mxu0 0.0
    %120 = vmatpush1.msra.mxu0 0.0
    %121 = vmatprep.mubr.f32.mxu0 0.0
    %122 = vmatmul.mubr.f32.gmra.mrb[0].mxu0 %v48
    %v123 = vpop.f32.mrb[0].mxu0
    %v124 = vadd.f32 %v44, %v123
    %v125 = vpop.f32.mrb[0].mxu0
    %126 = vmatprep.mubr.f32.mxu0 0.0
    %127 = vmatmul.mubr.f32.gmra.mrb[0].mxu0 %v51
    %v128 = vpop.f32.mrb[0].mxu0
    %v129 = vadd.f32 %v44, %v128
    %v130 = vpop.f32.mrb[0].mxu0
    %131 = vdwg.mxu0
    %v132 = vtanh.pop %v124
    %v133 = vtanh.pop %v129
    %v134 = vld [vmem:[%s3] sm:$0xff]
    %v135 = vld [vmem:[%s4] sm:$0x1]
    %v137 = vlaneseq
    %v138 = vshrl.u32 %v137, 7
    %v139 = vsub.s32 0, %v138
    %v140 = vrot.slane %v135, %v139
    %vm142 = vcmask 64512
    %v144 = vsel %vm142, %v132, 0
    %v147 = vsel %vm142, %v133, 0
    %149 = vmatprep.subr.mxu0 0.0
    %150 = vmatpush1.msra.mxu0 %v134
    %151 = vmatprep.subr.mxu0 0.0
    %152 = vmatpush1.msra.mxu0 0.0
    %153 = vmatprep.subr.mxu0 0.0
    %154 = vmatpush1.msra.mxu0 0.0
    %155 = vmatprep.subr.mxu0 0.0
    %156 = vmatpush1.msra.mxu0 0.0
    %157 = vmatprep.subr.mxu0 0.0
    %158 = vmatpush1.msra.mxu0 0.0
    %159 = vmatprep.subr.mxu0 0.0
    %160 = vmatpush1.msra.mxu0 0.0
    %161 = vmatprep.subr.mxu0 0.0
    %162 = vmatpush1.msra.mxu0 0.0
    %163 = vmatprep.subr.mxu0 0.0
    %164 = vmatpush1.msra.mxu0 0.0
    %165 = vmatprep.subr.mxu0 0.0
    %166 = vmatpush1.msra.mxu0 0.0
    %167 = vmatprep.subr.mxu0 0.0
    %168 = vmatpush1.msra.mxu0 0.0
    %169 = vmatprep.subr.mxu0 0.0
    %170 = vmatpush1.msra.mxu0 0.0
    %171 = vmatprep.subr.mxu0 0.0
    %172 = vmatpush1.msra.mxu0 0.0
    %173 = vmatprep.subr.mxu0 0.0
    %174 = vmatpush1.msra.mxu0 0.0
    %175 = vmatprep.subr.mxu0 0.0
    %176 = vmatpush1.msra.mxu0 0.0
    %177 = vmatprep.subr.mxu0 0.0
    %178 = vmatpush1.msra.mxu0 0.0
    %179 = vmatprep.subr.mxu0 0.0
    %180 = vmatpush1.msra.mxu0 0.0
    %181 = vmatprep.subr.mxu0 0.0
    %182 = vmatpush1.msra.mxu0 0.0
    %183 = vmatprep.subr.mxu0 0.0
    %184 = vmatpush1.msra.mxu0 0.0
    %185 = vmatprep.subr.mxu0 0.0
    %186 = vmatpush1.msra.mxu0 0.0
    %187 = vmatprep.subr.mxu0 0.0
    %188 = vmatpush1.msra.mxu0 0.0
    %189 = vmatprep.subr.mxu0 0.0
    %190 = vmatpush1.msra.mxu0 0.0
    %191 = vmatprep.subr.mxu0 0.0
    %192 = vmatpush1.msra.mxu0 0.0
    %193 = vmatprep.subr.mxu0 0.0
    %194 = vmatpush1.msra.mxu0 0.0
    %195 = vmatprep.subr.mxu0 0.0
    %196 = vmatpush1.msra.mxu0 0.0
    %197 = vmatprep.subr.mxu0 0.0
    %198 = vmatpush1.msra.mxu0 0.0
    %199 = vmatprep.subr.mxu0 0.0
    %200 = vmatpush1.msra.mxu0 0.0
    %201 = vmatprep.subr.mxu0 0.0
    %202 = vmatpush1.msra.mxu0 0.0
    %203 = vmatprep.subr.mxu0 0.0
    %204 = vmatpush1.msra.mxu0 0.0
    %205 = vmatprep.subr.mxu0 0.0
    %206 = vmatpush1.msra.mxu0 0.0
    %207 = vmatprep.subr.mxu0 0.0
    %208 = vmatpush1.msra.mxu0 0.0
    %209 = vmatprep.subr.mxu0 0.0
    %210 = vmatpush1.msra.mxu0 0.0
    %211 = vmatprep.subr.mxu0 0.0
    %212 = vmatpush1.msra.mxu0 0.0
    %213 = vmatprep.mubr.f32.mxu0 0.0
    %214 = vmatmul.mubr.f32.gmra.mrb[0].mxu0 %v144
    %v215 = vpop.f32.mrb[0].mxu0
    %v216 = vadd.f32 %v140, %v215
    %v217 = vpop.f32.mrb[0].mxu0
    %218 = vmatprep.mubr.f32.mxu0 0.0
    %219 = vmatmul.mubr.f32.gmra.mrb[0].mxu0 %v147
    %v220 = vpop.f32.mrb[0].mxu0
    %v221 = vadd.f32 %v140, %v220
    %v222 = vpop.f32.mrb[0].mxu0
    %223 = vdwg.mxu0
    %v224 = vsel %vm46, %v216, -inf
    %v225 = vrot.slane %v224, 4
    %v226 = vmax.f32 %v224, %v225
    %v227 = vrot.slane %v226, 2
    %v228 = vmax.f32 %v226, %v227
    %v229 = vrot.slane %v228, 1
    %v230 = vmax.f32 %v228, %v229
    %v231 = vsel %vm46, %v221, -inf
    %v232 = vrot.slane %v231, 4
    %v233 = vmax.f32 %v231, %v232
    %v234 = vrot.slane %v233, 2
    %v235 = vmax.f32 %v233, %v234
    %v236 = vrot.slane %v235, 1
    %v237 = vmax.f32 %v235, %v236
    %v238 = vsub.f32 %v216, %v230
    %v239 = vsub.f32 %v221, %v237
    %v240 = vmul.f32 %v238, 1.442695
    %v241 = vpow.pop %v240
    %v242 = vmul.f32 %v239, 1.442695
    %v243 = vpow.pop %v242
    %v244 = vlaneseq
    %v245 = vshrl.u32 %v244, 7
    %v246 = vlaneseq
    %v247 = vand.u32 %v246, 127
    %vm248 = vcmp.le.s32.totalorder %v247, %v245
    %v249 = vsel %vm248, 1, 0
    %v250 = vcvt.s32.f32 %v249
    %v252 = vsel %vm142, %v250, 0
    %254 = vmatprep.subr.mxu0 0.0
    %255 = vmatpush1.msra.mxu0 %v241
    %256 = vmatprep.subr.mxu0 0.0
    %257 = vmatpush1.msra.mxu0 0.0
    %258 = vmatprep.subr.mxu0 0.0
    %259 = vmatpush1.msra.mxu0 0.0
    %260 = vmatprep.subr.mxu0 0.0
    %261 = vmatpush1.msra.mxu0 0.0
    %262 = vmatprep.subr.mxu0 0.0
    %263 = vmatpush1.msra.mxu0 0.0
    %264 = vmatprep.subr.mxu0 0.0
    %265 = vmatpush1.msra.mxu0 0.0
    %266 = vmatprep.subr.mxu0 0.0
    %267 = vmatpush1.msra.mxu0 0.0
    %268 = vmatprep.subr.mxu0 0.0
    %269 = vmatpush1.msra.mxu0 0.0
    %270 = vmatprep.subr.mxu0 0.0
    %271 = vmatpush1.msra.mxu0 0.0
    %272 = vmatprep.subr.mxu0 0.0
    %273 = vmatpush1.msra.mxu0 0.0
    %274 = vmatprep.subr.mxu0 0.0
    %275 = vmatpush1.msra.mxu0 0.0
    %276 = vmatprep.subr.mxu0 0.0
    %277 = vmatpush1.msra.mxu0 0.0
    %278 = vmatprep.subr.mxu0 0.0
    %279 = vmatpush1.msra.mxu0 0.0
    %280 = vmatprep.subr.mxu0 0.0
    %281 = vmatpush1.msra.mxu0 0.0
    %282 = vmatprep.subr.mxu0 0.0
    %283 = vmatpush1.msra.mxu0 0.0
    %284 = vmatprep.subr.mxu0 0.0
    %285 = vmatpush1.msra.mxu0 0.0
    %286 = vmatprep.subr.mxu0 0.0
    %287 = vmatpush1.msra.mxu0 0.0
    %288 = vmatprep.subr.mxu0 0.0
    %289 = vmatpush1.msra.mxu0 0.0
    %290 = vmatprep.subr.mxu0 0.0
    %291 = vmatpush1.msra.mxu0 0.0
    %292 = vmatprep.subr.mxu0 0.0
    %293 = vmatpush1.msra.mxu0 0.0
    %294 = vmatprep.subr.mxu0 0.0
    %295 = vmatpush1.msra.mxu0 0.0
    %296 = vmatprep.subr.mxu0 0.0
    %297 = vmatpush1.msra.mxu0 0.0
    %298 = vmatprep.subr.mxu0 0.0
    %299 = vmatpush1.msra.mxu0 0.0
    %300 = vmatprep.subr.mxu0 0.0
    %301 = vmatpush1.msra.mxu0 0.0
    %302 = vmatprep.subr.mxu0 0.0
    %303 = vmatpush1.msra.mxu0 0.0
    %304 = vmatprep.subr.mxu0 0.0
    %305 = vmatpush1.msra.mxu0 0.0
    %306 = vmatprep.subr.mxu0 0.0
    %307 = vmatpush1.msra.mxu0 0.0
    %308 = vmatprep.subr.mxu0 0.0
    %309 = vmatpush1.msra.mxu0 0.0
    %310 = vmatprep.subr.mxu0 0.0
    %311 = vmatpush1.msra.mxu0 0.0
    %312 = vmatprep.subr.mxu0 0.0
    %313 = vmatpush1.msra.mxu0 0.0
    %314 = vmatprep.subr.mxu0 0.0
    %315 = vmatpush1.msra.mxu0 0.0
    %316 = vmatprep.subr.mxu0 0.0
    %317 = vmatpush1.msra.mxu0 0.0
    %318 = vmatprep.mubr.f32.mxu0 0.0
    %319 = vmatmul.mubr.f32.gmra.mrb[0].mxu0 %v252
    %v320 = vpop.f32.mrb[0].mxu0
    %v321 = vadd.f32 1e-30, %v320
    %v322 = vpop.f32.mrb[0].mxu0
    %323 = vdwg.mxu0
    %324 = vmatprep.subr.mxu0 0.0
    %325 = vmatpush1.msra.mxu0 %v243
    %326 = vmatprep.subr.mxu0 0.0
    %327 = vmatpush1.msra.mxu0 0.0
    %328 = vmatprep.subr.mxu0 0.0
    %329 = vmatpush1.msra.mxu0 0.0
    %330 = vmatprep.subr.mxu0 0.0
    %331 = vmatpush1.msra.mxu0 0.0
    %332 = vmatprep.subr.mxu0 0.0
    %333 = vmatpush1.msra.mxu0 0.0
    %334 = vmatprep.subr.mxu0 0.0
    %335 = vmatpush1.msra.mxu0 0.0
    %336 = vmatprep.subr.mxu0 0.0
    %337 = vmatpush1.msra.mxu0 0.0
    %338 = vmatprep.subr.mxu0 0.0
    %339 = vmatpush1.msra.mxu0 0.0
    %340 = vmatprep.subr.mxu0 0.0
    %341 = vmatpush1.msra.mxu0 0.0
    %342 = vmatprep.subr.mxu0 0.0
    %343 = vmatpush1.msra.mxu0 0.0
    %344 = vmatprep.subr.mxu0 0.0
    %345 = vmatpush1.msra.mxu0 0.0
    %346 = vmatprep.subr.mxu0 0.0
    %347 = vmatpush1.msra.mxu0 0.0
    %348 = vmatprep.subr.mxu0 0.0
    %349 = vmatpush1.msra.mxu0 0.0
    %350 = vmatprep.subr.mxu0 0.0
    %351 = vmatpush1.msra.mxu0 0.0
    %352 = vmatprep.subr.mxu0 0.0
    %353 = vmatpush1.msra.mxu0 0.0
    %354 = vmatprep.subr.mxu0 0.0
    %355 = vmatpush1.msra.mxu0 0.0
    %356 = vmatprep.subr.mxu0 0.0
    %357 = vmatpush1.msra.mxu0 0.0
    %358 = vmatprep.subr.mxu0 0.0
    %359 = vmatpush1.msra.mxu0 0.0
    %360 = vmatprep.subr.mxu0 0.0
    %361 = vmatpush1.msra.mxu0 0.0
    %362 = vmatprep.subr.mxu0 0.0
    %363 = vmatpush1.msra.mxu0 0.0
    %364 = vmatprep.subr.mxu0 0.0
    %365 = vmatpush1.msra.mxu0 0.0
    %366 = vmatprep.subr.mxu0 0.0
    %367 = vmatpush1.msra.mxu0 0.0
    %368 = vmatprep.subr.mxu0 0.0
    %369 = vmatpush1.msra.mxu0 0.0
    %370 = vmatprep.subr.mxu0 0.0
    %371 = vmatpush1.msra.mxu0 0.0
    %372 = vmatprep.subr.mxu0 0.0
    %373 = vmatpush1.msra.mxu0 0.0
    %374 = vmatprep.subr.mxu0 0.0
    %375 = vmatpush1.msra.mxu0 0.0
    %376 = vmatprep.subr.mxu0 0.0
    %377 = vmatpush1.msra.mxu0 0.0
    %378 = vmatprep.subr.mxu0 0.0
    %379 = vmatpush1.msra.mxu0 0.0
    %380 = vmatprep.subr.mxu0 0.0
    %381 = vmatpush1.msra.mxu0 0.0
    %382 = vmatprep.subr.mxu0 0.0
    %383 = vmatpush1.msra.mxu0 0.0
    %384 = vmatprep.subr.mxu0 0.0
    %385 = vmatpush1.msra.mxu0 0.0
    %386 = vmatprep.subr.mxu0 0.0
    %387 = vmatpush1.msra.mxu0 0.0
    %388 = vmatprep.mubr.f32.mxu0 0.0
    %389 = vmatmul.mubr.f32.gmra.mrb[0].mxu0 %v252
    %v390 = vpop.f32.mrb[0].mxu0
    %v391 = vadd.f32 1e-30, %v390
    %v392 = vpop.f32.mrb[0].mxu0
    %393 = vdwg.mxu0
    %v394 = vrcp.pop %v321
    %v395 = vrcp.pop %v391
    %v396 = vmul.f32 %v394, 0.25
    %v397 = vmul.f32 %v395, 0.25
    %v399 = vsel %vm46, %v396, 0
    %v402 = vsel %vm46, %v241, 0
    %404 = vmatprep.subr.mxu0 0.0
    %405 = vmatpush1.xpose.msra.mxu0 %v402
    %406 = vmatprep.subr.mxu0 0.0
    %407 = vmatpush1.xpose.msra.mxu0 0.0
    %408 = vmatprep.subr.mxu0 0.0
    %409 = vmatpush1.xpose.msra.mxu0 0.0
    %410 = vmatprep.subr.mxu0 0.0
    %411 = vmatpush1.xpose.msra.mxu0 0.0
    %412 = vmatprep.subr.mxu0 0.0
    %413 = vmatpush1.xpose.msra.mxu0 0.0
    %414 = vmatprep.subr.mxu0 0.0
    %415 = vmatpush1.xpose.msra.mxu0 0.0
    %416 = vmatprep.subr.mxu0 0.0
    %417 = vmatpush1.xpose.msra.mxu0 0.0
    %418 = vmatprep.subr.mxu0 0.0
    %419 = vmatpush1.xpose.msra.mxu0 0.0
    %420 = vmatprep.subr.mxu0 0.0
    %421 = vmatpush1.xpose.msra.mxu0 0.0
    %422 = vmatprep.subr.mxu0 0.0
    %423 = vmatpush1.xpose.msra.mxu0 0.0
    %424 = vmatprep.subr.mxu0 0.0
    %425 = vmatpush1.xpose.msra.mxu0 0.0
    %426 = vmatprep.subr.mxu0 0.0
    %427 = vmatpush1.xpose.msra.mxu0 0.0
    %428 = vmatprep.subr.mxu0 0.0
    %429 = vmatpush1.xpose.msra.mxu0 0.0
    %430 = vmatprep.subr.mxu0 0.0
    %431 = vmatpush1.xpose.msra.mxu0 0.0
    %432 = vmatprep.subr.mxu0 0.0
    %433 = vmatpush1.xpose.msra.mxu0 0.0
    %434 = vmatprep.subr.mxu0 0.0
    %435 = vmatpush1.xpose.msra.mxu0 0.0
    %436 = vmatprep.subr.mxu0 0.0
    %437 = vmatpush1.xpose.msra.mxu0 0.0
    %438 = vmatprep.subr.mxu0 0.0
    %439 = vmatpush1.xpose.msra.mxu0 0.0
    %440 = vmatprep.subr.mxu0 0.0
    %441 = vmatpush1.xpose.msra.mxu0 0.0
    %442 = vmatprep.subr.mxu0 0.0
    %443 = vmatpush1.xpose.msra.mxu0 0.0
    %444 = vmatprep.subr.mxu0 0.0
    %445 = vmatpush1.xpose.msra.mxu0 0.0
    %446 = vmatprep.subr.mxu0 0.0
    %447 = vmatpush1.xpose.msra.mxu0 0.0
    %448 = vmatprep.subr.mxu0 0.0
    %449 = vmatpush1.xpose.msra.mxu0 0.0
    %450 = vmatprep.subr.mxu0 0.0
    %451 = vmatpush1.xpose.msra.mxu0 0.0
    %452 = vmatprep.subr.mxu0 0.0
    %453 = vmatpush1.xpose.msra.mxu0 0.0
    %454 = vmatprep.subr.mxu0 0.0
    %455 = vmatpush1.xpose.msra.mxu0 0.0
    %456 = vmatprep.subr.mxu0 0.0
    %457 = vmatpush1.xpose.msra.mxu0 0.0
    %458 = vmatprep.subr.mxu0 0.0
    %459 = vmatpush1.xpose.msra.mxu0 0.0
    %460 = vmatprep.subr.mxu0 0.0
    %461 = vmatpush1.xpose.msra.mxu0 0.0
    %462 = vmatprep.subr.mxu0 0.0
    %463 = vmatpush1.xpose.msra.mxu0 0.0
    %464 = vmatprep.subr.mxu0 0.0
    %465 = vmatpush1.xpose.msra.mxu0 0.0
    %466 = vmatprep.subr.mxu0 0.0
    %467 = vmatpush1.xpose.msra.mxu0 0.0
    %468 = vmatprep.mubr.f32.mxu0 0.0
    %469 = vmatmul.mubr.f32.gmra.mrb[0].mxu0 %v399
    %v470 = vpop.f32.mrb[0].mxu0
    %v471 = vadd.f32 0.0, %v470
    %v472 = vpop.f32.mrb[0].mxu0
    %473 = vdwg.mxu0
    %v475 = vsel %vm46, %v397, 0
    %v478 = vsel %vm46, %v243, 0
    %480 = vmatprep.subr.mxu0 0.0
    %481 = vmatpush1.xpose.msra.mxu0 %v478
    %482 = vmatprep.subr.mxu0 0.0
    %483 = vmatpush1.xpose.msra.mxu0 0.0
    %484 = vmatprep.subr.mxu0 0.0
    %485 = vmatpush1.xpose.msra.mxu0 0.0
    %486 = vmatprep.subr.mxu0 0.0
    %487 = vmatpush1.xpose.msra.mxu0 0.0
    %488 = vmatprep.subr.mxu0 0.0
    %489 = vmatpush1.xpose.msra.mxu0 0.0
    %490 = vmatprep.subr.mxu0 0.0
    %491 = vmatpush1.xpose.msra.mxu0 0.0
    %492 = vmatprep.subr.mxu0 0.0
    %493 = vmatpush1.xpose.msra.mxu0 0.0
    %494 = vmatprep.subr.mxu0 0.0
    %495 = vmatpush1.xpose.msra.mxu0 0.0
    %496 = vmatprep.subr.mxu0 0.0
    %497 = vmatpush1.xpose.msra.mxu0 0.0
    %498 = vmatprep.subr.mxu0 0.0
    %499 = vmatpush1.xpose.msra.mxu0 0.0
    %500 = vmatprep.subr.mxu0 0.0
    %501 = vmatpush1.xpose.msra.mxu0 0.0
    %502 = vmatprep.subr.mxu0 0.0
    %503 = vmatpush1.xpose.msra.mxu0 0.0
    %504 = vmatprep.subr.mxu0 0.0
    %505 = vmatpush1.xpose.msra.mxu0 0.0
    %506 = vmatprep.subr.mxu0 0.0
    %507 = vmatpush1.xpose.msra.mxu0 0.0
    %508 = vmatprep.subr.mxu0 0.0
    %509 = vmatpush1.xpose.msra.mxu0 0.0
    %510 = vmatprep.subr.mxu0 0.0
    %511 = vmatpush1.xpose.msra.mxu0 0.0
    %512 = vmatprep.subr.mxu0 0.0
    %513 = vmatpush1.xpose.msra.mxu0 0.0
    %514 = vmatprep.subr.mxu0 0.0
    %515 = vmatpush1.xpose.msra.mxu0 0.0
    %516 = vmatprep.subr.mxu0 0.0
    %517 = vmatpush1.xpose.msra.mxu0 0.0
    %518 = vmatprep.subr.mxu0 0.0
    %519 = vmatpush1.xpose.msra.mxu0 0.0
    %520 = vmatprep.subr.mxu0 0.0
    %521 = vmatpush1.xpose.msra.mxu0 0.0
    %522 = vmatprep.subr.mxu0 0.0
    %523 = vmatpush1.xpose.msra.mxu0 0.0
    %524 = vmatprep.subr.mxu0 0.0
    %525 = vmatpush1.xpose.msra.mxu0 0.0
    %526 = vmatprep.subr.mxu0 0.0
    %527 = vmatpush1.xpose.msra.mxu0 0.0
    %528 = vmatprep.subr.mxu0 0.0
    %529 = vmatpush1.xpose.msra.mxu0 0.0
    %530 = vmatprep.subr.mxu0 0.0
    %531 = vmatpush1.xpose.msra.mxu0 0.0
    %532 = vmatprep.subr.mxu0 0.0
    %533 = vmatpush1.xpose.msra.mxu0 0.0
    %534 = vmatprep.subr.mxu0 0.0
    %535 = vmatpush1.xpose.msra.mxu0 0.0
    %536 = vmatprep.subr.mxu0 0.0
    %537 = vmatpush1.xpose.msra.mxu0 0.0
    %538 = vmatprep.subr.mxu0 0.0
    %539 = vmatpush1.xpose.msra.mxu0 0.0
    %540 = vmatprep.subr.mxu0 0.0
    %541 = vmatpush1.xpose.msra.mxu0 0.0
    %542 = vmatprep.subr.mxu0 0.0
    %543 = vmatpush1.xpose.msra.mxu0 0.0
    %544 = vmatprep.mubr.f32.mxu0 0.0
    %545 = vmatmul.mubr.f32.gmra.mrb[0].mxu0 %v475
    %v546 = vpop.f32.mrb[0].mxu0
    %v547 = vadd.f32 0.0, %v546
    %v548 = vpop.f32.mrb[0].mxu0
    %549 = vdwg.mxu0
    %v550 = vmul.f32 %v471, %v250
    %v551 = vmul.f32 %v547, %v250
    %v553 = vsel %vm142, %v550, 0
    %555 = vmatprep.subr.mxu0 0.0
    %556 = vmatpush1.msra.mxu0 %v36
    %557 = vmatprep.subr.mxu0 0.0
    %558 = vmatpush1.msra.mxu0 0.0
    %559 = vmatprep.subr.mxu0 0.0
    %560 = vmatpush1.msra.mxu0 0.0
    %561 = vmatprep.subr.mxu0 0.0
    %562 = vmatpush1.msra.mxu0 0.0
    %563 = vmatprep.subr.mxu0 0.0
    %564 = vmatpush1.msra.mxu0 0.0
    %565 = vmatprep.subr.mxu0 0.0
    %566 = vmatpush1.msra.mxu0 0.0
    %567 = vmatprep.subr.mxu0 0.0
    %568 = vmatpush1.msra.mxu0 0.0
    %569 = vmatprep.subr.mxu0 0.0
    %570 = vmatpush1.msra.mxu0 0.0
    %571 = vmatprep.subr.mxu0 0.0
    %572 = vmatpush1.msra.mxu0 0.0
    %573 = vmatprep.subr.mxu0 0.0
    %574 = vmatpush1.msra.mxu0 0.0
    %575 = vmatprep.subr.mxu0 0.0
    %576 = vmatpush1.msra.mxu0 0.0
    %577 = vmatprep.subr.mxu0 0.0
    %578 = vmatpush1.msra.mxu0 0.0
    %579 = vmatprep.subr.mxu0 0.0
    %580 = vmatpush1.msra.mxu0 0.0
    %581 = vmatprep.subr.mxu0 0.0
    %582 = vmatpush1.msra.mxu0 0.0
    %583 = vmatprep.subr.mxu0 0.0
    %584 = vmatpush1.msra.mxu0 0.0
    %585 = vmatprep.subr.mxu0 0.0
    %586 = vmatpush1.msra.mxu0 0.0
    %587 = vmatprep.subr.mxu0 0.0
    %588 = vmatpush1.msra.mxu0 0.0
    %589 = vmatprep.subr.mxu0 0.0
    %590 = vmatpush1.msra.mxu0 0.0
    %591 = vmatprep.subr.mxu0 0.0
    %592 = vmatpush1.msra.mxu0 0.0
    %593 = vmatprep.subr.mxu0 0.0
    %594 = vmatpush1.msra.mxu0 0.0
    %595 = vmatprep.subr.mxu0 0.0
    %596 = vmatpush1.msra.mxu0 0.0
    %597 = vmatprep.subr.mxu0 0.0
    %598 = vmatpush1.msra.mxu0 0.0
    %599 = vmatprep.subr.mxu0 0.0
    %600 = vmatpush1.msra.mxu0 0.0
    %601 = vmatprep.subr.mxu0 0.0
    %602 = vmatpush1.msra.mxu0 0.0
    %603 = vmatprep.subr.mxu0 0.0
    %604 = vmatpush1.msra.mxu0 0.0
    %605 = vmatprep.subr.mxu0 0.0
    %606 = vmatpush1.msra.mxu0 0.0
    %607 = vmatprep.subr.mxu0 0.0
    %608 = vmatpush1.msra.mxu0 0.0
    %609 = vmatprep.subr.mxu0 0.0
    %610 = vmatpush1.msra.mxu0 0.0
    %611 = vmatprep.subr.mxu0 0.0
    %612 = vmatpush1.msra.mxu0 0.0
    %613 = vmatprep.subr.mxu0 0.0
    %614 = vmatpush1.msra.mxu0 0.0
    %615 = vmatprep.subr.mxu0 0.0
    %616 = vmatpush1.msra.mxu0 0.0
    %617 = vmatprep.subr.mxu0 0.0
    %618 = vmatpush1.msra.mxu0 0.0
    %619 = vmatprep.mubr.f32.mxu0 0.0
    %620 = vmatmul.mubr.f32.gmra.mrb[0].mxu0 %v553
    %v621 = vpop.f32.mrb[0].mxu0
    %v622 = vadd.f32 0.0, %v621
    %v623 = vpop.f32.mrb[0].mxu0
    %624 = vdwg.mxu0
    %v626 = vsel %vm142, %v551, 0
    %628 = vmatprep.subr.mxu0 0.0
    %629 = vmatpush1.msra.mxu0 %v37
    %630 = vmatprep.subr.mxu0 0.0
    %631 = vmatpush1.msra.mxu0 0.0
    %632 = vmatprep.subr.mxu0 0.0
    %633 = vmatpush1.msra.mxu0 0.0
    %634 = vmatprep.subr.mxu0 0.0
    %635 = vmatpush1.msra.mxu0 0.0
    %636 = vmatprep.subr.mxu0 0.0
    %637 = vmatpush1.msra.mxu0 0.0
    %638 = vmatprep.subr.mxu0 0.0
    %639 = vmatpush1.msra.mxu0 0.0
    %640 = vmatprep.subr.mxu0 0.0
    %641 = vmatpush1.msra.mxu0 0.0
    %642 = vmatprep.subr.mxu0 0.0
    %643 = vmatpush1.msra.mxu0 0.0
    %644 = vmatprep.subr.mxu0 0.0
    %645 = vmatpush1.msra.mxu0 0.0
    %646 = vmatprep.subr.mxu0 0.0
    %647 = vmatpush1.msra.mxu0 0.0
    %648 = vmatprep.subr.mxu0 0.0
    %649 = vmatpush1.msra.mxu0 0.0
    %650 = vmatprep.subr.mxu0 0.0
    %651 = vmatpush1.msra.mxu0 0.0
    %652 = vmatprep.subr.mxu0 0.0
    %653 = vmatpush1.msra.mxu0 0.0
    %654 = vmatprep.subr.mxu0 0.0
    %655 = vmatpush1.msra.mxu0 0.0
    %656 = vmatprep.subr.mxu0 0.0
    %657 = vmatpush1.msra.mxu0 0.0
    %658 = vmatprep.subr.mxu0 0.0
    %659 = vmatpush1.msra.mxu0 0.0
    %660 = vmatprep.subr.mxu0 0.0
    %661 = vmatpush1.msra.mxu0 0.0
    %662 = vmatprep.subr.mxu0 0.0
    %663 = vmatpush1.msra.mxu0 0.0
    %664 = vmatprep.subr.mxu0 0.0
    %665 = vmatpush1.msra.mxu0 0.0
    %666 = vmatprep.subr.mxu0 0.0
    %667 = vmatpush1.msra.mxu0 0.0
    %668 = vmatprep.subr.mxu0 0.0
    %669 = vmatpush1.msra.mxu0 0.0
    %670 = vmatprep.subr.mxu0 0.0
    %671 = vmatpush1.msra.mxu0 0.0
    %672 = vmatprep.subr.mxu0 0.0
    %673 = vmatpush1.msra.mxu0 0.0
    %674 = vmatprep.subr.mxu0 0.0
    %675 = vmatpush1.msra.mxu0 0.0
    %676 = vmatprep.subr.mxu0 0.0
    %677 = vmatpush1.msra.mxu0 0.0
    %678 = vmatprep.subr.mxu0 0.0
    %679 = vmatpush1.msra.mxu0 0.0
    %680 = vmatprep.subr.mxu0 0.0
    %681 = vmatpush1.msra.mxu0 0.0
    %682 = vmatprep.subr.mxu0 0.0
    %683 = vmatpush1.msra.mxu0 0.0
    %684 = vmatprep.subr.mxu0 0.0
    %685 = vmatpush1.msra.mxu0 0.0
    %686 = vmatprep.subr.mxu0 0.0
    %687 = vmatpush1.msra.mxu0 0.0
    %688 = vmatprep.subr.mxu0 0.0
    %689 = vmatpush1.msra.mxu0 0.0
    %690 = vmatprep.subr.mxu0 0.0
    %691 = vmatpush1.msra.mxu0 0.0
    %692 = vmatprep.mubr.f32.mxu0 0.0
    %693 = vmatmul.mubr.f32.gmra.mrb[0].mxu0 %v626
    %v694 = vpop.f32.mrb[0].mxu0
    %v695 = vadd.f32 0.0, %v694
    %v696 = vpop.f32.mrb[0].mxu0
    %697 = vdwg.mxu0
    %v698 = vld [vmem:[%s5] sm:$0xf]
    %v699 = vld [vmem:[%s6] sm:$0x1]
    %v701 = vlaneseq
    %v702 = vshrl.u32 %v701, 7
    %v703 = vsub.s32 0, %v702
    %v704 = vrot.slane %v699, %v703
    %v707 = vsel %vm46, %v622, 0
    %v710 = vsel %vm46, %v695, 0
    %v713 = vsel %vm53, %v698, 0
    %715 = vmatprep.subr.mxu0 0.0
    %716 = vmatpush1.msra.mxu0 %v713
    %717 = vmatprep.subr.mxu0 0.0
    %718 = vmatpush1.msra.mxu0 0.0
    %719 = vmatprep.subr.mxu0 0.0
    %720 = vmatpush1.msra.mxu0 0.0
    %721 = vmatprep.subr.mxu0 0.0
    %722 = vmatpush1.msra.mxu0 0.0
    %723 = vmatprep.subr.mxu0 0.0
    %724 = vmatpush1.msra.mxu0 0.0
    %725 = vmatprep.subr.mxu0 0.0
    %726 = vmatpush1.msra.mxu0 0.0
    %727 = vmatprep.subr.mxu0 0.0
    %728 = vmatpush1.msra.mxu0 0.0
    %729 = vmatprep.subr.mxu0 0.0
    %730 = vmatpush1.msra.mxu0 0.0
    %731 = vmatprep.subr.mxu0 0.0
    %732 = vmatpush1.msra.mxu0 0.0
    %733 = vmatprep.subr.mxu0 0.0
    %734 = vmatpush1.msra.mxu0 0.0
    %735 = vmatprep.subr.mxu0 0.0
    %736 = vmatpush1.msra.mxu0 0.0
    %737 = vmatprep.subr.mxu0 0.0
    %738 = vmatpush1.msra.mxu0 0.0
    %739 = vmatprep.subr.mxu0 0.0
    %740 = vmatpush1.msra.mxu0 0.0
    %741 = vmatprep.subr.mxu0 0.0
    %742 = vmatpush1.msra.mxu0 0.0
    %743 = vmatprep.subr.mxu0 0.0
    %744 = vmatpush1.msra.mxu0 0.0
    %745 = vmatprep.subr.mxu0 0.0
    %746 = vmatpush1.msra.mxu0 0.0
    %747 = vmatprep.subr.mxu0 0.0
    %748 = vmatpush1.msra.mxu0 0.0
    %749 = vmatprep.subr.mxu0 0.0
    %750 = vmatpush1.msra.mxu0 0.0
    %751 = vmatprep.subr.mxu0 0.0
    %752 = vmatpush1.msra.mxu0 0.0
    %753 = vmatprep.subr.mxu0 0.0
    %754 = vmatpush1.msra.mxu0 0.0
    %755 = vmatprep.subr.mxu0 0.0
    %756 = vmatpush1.msra.mxu0 0.0
    %757 = vmatprep.subr.mxu0 0.0
    %758 = vmatpush1.msra.mxu0 0.0
    %759 = vmatprep.subr.mxu0 0.0
    %760 = vmatpush1.msra.mxu0 0.0
    %761 = vmatprep.subr.mxu0 0.0
    %762 = vmatpush1.msra.mxu0 0.0
    %763 = vmatprep.subr.mxu0 0.0
    %764 = vmatpush1.msra.mxu0 0.0
    %765 = vmatprep.subr.mxu0 0.0
    %766 = vmatpush1.msra.mxu0 0.0
    %767 = vmatprep.subr.mxu0 0.0
    %768 = vmatpush1.msra.mxu0 0.0
    %769 = vmatprep.subr.mxu0 0.0
    %770 = vmatpush1.msra.mxu0 0.0
    %771 = vmatprep.subr.mxu0 0.0
    %772 = vmatpush1.msra.mxu0 0.0
    %773 = vmatprep.subr.mxu0 0.0
    %774 = vmatpush1.msra.mxu0 0.0
    %775 = vmatprep.subr.mxu0 0.0
    %776 = vmatpush1.msra.mxu0 0.0
    %777 = vmatprep.subr.mxu0 0.0
    %778 = vmatpush1.msra.mxu0 0.0
    %779 = vmatprep.mubr.f32.mxu0 0.0
    %780 = vmatmul.mubr.f32.gmra.mrb[0].mxu0 %v707
    %v781 = vpop.f32.mrb[0].mxu0
    %v782 = vadd.f32 %v704, %v781
    %v783 = vpop.f32.mrb[0].mxu0
    %784 = vmatprep.mubr.f32.mxu0 0.0
    %785 = vmatmul.mubr.f32.gmra.mrb[0].mxu0 %v710
    %v786 = vpop.f32.mrb[0].mxu0
    %v787 = vadd.f32 %v704, %v786
    %v788 = vpop.f32.mrb[0].mxu0
    %789 = vdwg.mxu0
    %v790 = vld [vmem:[%s7] sm:$0xff]
    %v791 = vld [vmem:[%s7 + $0x8] sm:$0xff]
    %v792 = vld [vmem:[%s7 + $0x10] sm:$0xff]
    %v793 = vld [vmem:[%s7 + $0x18] sm:$0xff]
    %v794 = vxor.u32 %v782, 2147483648
    %v795 = vxor.u32 %v787, 2147483648
    %v796 = vmul.f32 %v794, 1.442695
    %v797 = vpow.pop %v796
    %v798 = vmul.f32 %v795, 1.442695
    %v799 = vpow.pop %v798
    %v800 = vadd.f32 %v797, 1.0
    %v801 = vadd.f32 %v799, 1.0
    %v802 = vrcp.pop %v800
    %v803 = vmul.f32 1.0, %v802
    %v804 = vrcp.pop %v801
    %v805 = vmul.f32 1.0, %v804
    %v806 = vtanh.pop %v782
    %v807 = vtanh.pop %v787
    %v808 = vmul.f32 %v803, 0.0
    %v809 = vmul.f32 %v805, 0.0
    %812 = vrot.lane.b32.xlu0 %v806, 64
    %v813 = vpop.permute.xlu0 %812
    %814 = vrot.lane.b32.xlu0 %v807, 64
    %v815 = vpop.permute.xlu0 %814
    %v818 = vmul.f32 %v803, %v813
    %v819 = vmul.f32 %v805, %v815
    %822 = vrot.lane.b32.xlu0 %v818, 32
    %v823 = vpop.permute.xlu0 %822
    %824 = vrot.lane.b32.xlu0 %v819, 32
    %v825 = vpop.permute.xlu0 %824
    %v828 = vadd.f32 %v808, %v823
    %v829 = vadd.f32 %v809, %v825
    %v830 = vtanh.pop %v828
    %v831 = vtanh.pop %v829
    %834 = vrot.lane.b32.xlu0 %v830, 64
    %v835 = vpop.permute.xlu0 %834
    %836 = vrot.lane.b32.xlu0 %v831, 64
    %v837 = vpop.permute.xlu0 %836
    %v840 = vmul.f32 %v803, %v835
    %v841 = vmul.f32 %v805, %v837
    %v844 = vrot.slane %v841, 7
    %vm845 = vcmask 1041409
    %v846 = vsel %vm845, %v844, %v840
    %847 = vrot.lane.b32.xlu0 %v846, 32
    %v848 = vpop.permute.xlu0 %847
    %vm849 = vcmask 261120
    %v850 = vsel %vm849, %v848, 0
    %852 = vmatprep.subr.mxu0 0.0
    %853 = vmatpush1.msra.mxu0 %v790
    %854 = vmatprep.subr.mxu0 0.0
    %855 = vmatpush1.msra.mxu0 %v791
    %856 = vmatprep.subr.mxu0 0.0
    %857 = vmatpush1.msra.mxu0 %v792
    %858 = vmatprep.subr.mxu0 0.0
    %859 = vmatpush1.msra.mxu0 %v793
    %860 = vmatprep.subr.mxu0 0.0
    %861 = vmatpush1.msra.mxu0 0.0
    %862 = vmatprep.subr.mxu0 0.0
    %863 = vmatpush1.msra.mxu0 0.0
    %864 = vmatprep.subr.mxu0 0.0
    %865 = vmatpush1.msra.mxu0 0.0
    %866 = vmatprep.subr.mxu0 0.0
    %867 = vmatpush1.msra.mxu0 0.0
    %868 = vmatprep.subr.mxu0 0.0
    %869 = vmatpush1.msra.mxu0 0.0
    %870 = vmatprep.subr.mxu0 0.0
    %871 = vmatpush1.msra.mxu0 0.0
    %872 = vmatprep.subr.mxu0 0.0
    %873 = vmatpush1.msra.mxu0 0.0
    %874 = vmatprep.subr.mxu0 0.0
    %875 = vmatpush1.msra.mxu0 0.0
    %876 = vmatprep.subr.mxu0 0.0
    %877 = vmatpush1.msra.mxu0 0.0
    %878 = vmatprep.subr.mxu0 0.0
    %879 = vmatpush1.msra.mxu0 0.0
    %880 = vmatprep.subr.mxu0 0.0
    %881 = vmatpush1.msra.mxu0 0.0
    %882 = vmatprep.subr.mxu0 0.0
    %883 = vmatpush1.msra.mxu0 0.0
    %884 = vmatprep.subr.mxu0 0.0
    %885 = vmatpush1.msra.mxu0 0.0
    %886 = vmatprep.subr.mxu0 0.0
    %887 = vmatpush1.msra.mxu0 0.0
    %888 = vmatprep.subr.mxu0 0.0
    %889 = vmatpush1.msra.mxu0 0.0
    %890 = vmatprep.subr.mxu0 0.0
    %891 = vmatpush1.msra.mxu0 0.0
    %892 = vmatprep.subr.mxu0 0.0
    %893 = vmatpush1.msra.mxu0 0.0
    %894 = vmatprep.subr.mxu0 0.0
    %895 = vmatpush1.msra.mxu0 0.0
    %896 = vmatprep.subr.mxu0 0.0
    %897 = vmatpush1.msra.mxu0 0.0
    %898 = vmatprep.subr.mxu0 0.0
    %899 = vmatpush1.msra.mxu0 0.0
    %900 = vmatprep.subr.mxu0 0.0
    %901 = vmatpush1.msra.mxu0 0.0
    %902 = vmatprep.subr.mxu0 0.0
    %903 = vmatpush1.msra.mxu0 0.0
    %904 = vmatprep.subr.mxu0 0.0
    %905 = vmatpush1.msra.mxu0 0.0
    %906 = vmatprep.subr.mxu0 0.0
    %907 = vmatpush1.msra.mxu0 0.0
    %908 = vmatprep.subr.mxu0 0.0
    %909 = vmatpush1.msra.mxu0 0.0
    %910 = vmatprep.subr.mxu0 0.0
    %911 = vmatpush1.msra.mxu0 0.0
    %912 = vmatprep.subr.mxu0 0.0
    %913 = vmatpush1.msra.mxu0 0.0
    %914 = vmatprep.subr.mxu0 0.0
    %915 = vmatpush1.msra.mxu0 0.0
    %916 = vmatprep.mubr.f32.mxu0 0.0
    %917 = vmatmul.mubr.f32.gmra.mrb[0].mxu0 %v850
    %v918 = vpop.f32.mrb[0].mxu0
    %v919 = vadd.f32 0.0, %v918
    %v920 = vpop.f32.mrb[0].mxu0
    %921 = vdwg.mxu0
    %v923 = vrot.slane %v919, 7
    %v926 = vadd.f32 %v782, %v923
    %v927 = vadd.f32 %v787, %v919
    %v928 = vxor.u32 %v926, 2147483648
    %v929 = vxor.u32 %v927, 2147483648
    %v930 = vmul.f32 %v928, 1.442695
    %v931 = vpow.pop %v930
    %v932 = vmul.f32 %v929, 1.442695
    %v933 = vpow.pop %v932
    %v934 = vadd.f32 %v931, 1.0
    %v935 = vadd.f32 %v933, 1.0
    %v936 = vrcp.pop %v934
    %v937 = vmul.f32 1.0, %v936
    %v938 = vrcp.pop %v935
    %v939 = vmul.f32 1.0, %v938
    %v940 = vtanh.pop %v926
    %v941 = vtanh.pop %v927
    %v944 = vrot.slane %v828, 7
    %v945 = vrot.slane %v829, 7
    %v948 = vmul.f32 %v937, %v944
    %v949 = vmul.f32 %v939, %v945
    %952 = vrot.lane.b32.xlu0 %v940, 64
    %v953 = vpop.permute.xlu0 %952
    %954 = vrot.lane.b32.xlu0 %v941, 64
    %v955 = vpop.permute.xlu0 %954
    %v958 = vmul.f32 %v937, %v953
    %v959 = vmul.f32 %v939, %v955
    %962 = vrot.lane.b32.xlu0 %v958, 32
    %v963 = vpop.permute.xlu0 %962
    %964 = vrot.lane.b32.xlu0 %v959, 32
    %v965 = vpop.permute.xlu0 %964
    %v968 = vadd.f32 %v948, %v963
    %v969 = vadd.f32 %v949, %v965
    %v970 = vtanh.pop %v968
    %v971 = vtanh.pop %v969
    %974 = vrot.lane.b32.xlu0 %v970, 64
    %v975 = vpop.permute.xlu0 %974
    %976 = vrot.lane.b32.xlu0 %v971, 64
    %v977 = vpop.permute.xlu0 %976
    %v980 = vmul.f32 %v937, %v975
    %v981 = vmul.f32 %v939, %v977
    %v984 = vrot.slane %v980, 1
    %v985 = vsel %vm845, %v981, %v984
    %986 = vrot.lane.b32.xlu0 %v985, 32
    %v987 = vpop.permute.xlu0 %986
    %v988 = vsel %vm849, %v987, 0
    %990 = vmatprep.subr.mxu0 0.0
    %991 = vmatpush1.msra.mxu0 %v790
    %992 = vmatprep.subr.mxu0 0.0
    %993 = vmatpush1.msra.mxu0 %v791
    %994 = vmatprep.subr.mxu0 0.0
    %995 = vmatpush1.msra.mxu0 %v792
    %996 = vmatprep.subr.mxu0 0.0
    %997 = vmatpush1.msra.mxu0 %v793
    %998 = vmatprep.subr.mxu0 0.0
    %999 = vmatpush1.msra.mxu0 0.0
    %1000 = vmatprep.subr.mxu0 0.0
    %1001 = vmatpush1.msra.mxu0 0.0
    %1002 = vmatprep.subr.mxu0 0.0
    %1003 = vmatpush1.msra.mxu0 0.0
    %1004 = vmatprep.subr.mxu0 0.0
    %1005 = vmatpush1.msra.mxu0 0.0
    %1006 = vmatprep.subr.mxu0 0.0
    %1007 = vmatpush1.msra.mxu0 0.0
    %1008 = vmatprep.subr.mxu0 0.0
    %1009 = vmatpush1.msra.mxu0 0.0
    %1010 = vmatprep.subr.mxu0 0.0
    %1011 = vmatpush1.msra.mxu0 0.0
    %1012 = vmatprep.subr.mxu0 0.0
    %1013 = vmatpush1.msra.mxu0 0.0
    %1014 = vmatprep.subr.mxu0 0.0
    %1015 = vmatpush1.msra.mxu0 0.0
    %1016 = vmatprep.subr.mxu0 0.0
    %1017 = vmatpush1.msra.mxu0 0.0
    %1018 = vmatprep.subr.mxu0 0.0
    %1019 = vmatpush1.msra.mxu0 0.0
    %1020 = vmatprep.subr.mxu0 0.0
    %1021 = vmatpush1.msra.mxu0 0.0
    %1022 = vmatprep.subr.mxu0 0.0
    %1023 = vmatpush1.msra.mxu0 0.0
    %1024 = vmatprep.subr.mxu0 0.0
    %1025 = vmatpush1.msra.mxu0 0.0
    %1026 = vmatprep.subr.mxu0 0.0
    %1027 = vmatpush1.msra.mxu0 0.0
    %1028 = vmatprep.subr.mxu0 0.0
    %1029 = vmatpush1.msra.mxu0 0.0
    %1030 = vmatprep.subr.mxu0 0.0
    %1031 = vmatpush1.msra.mxu0 0.0
    %1032 = vmatprep.subr.mxu0 0.0
    %1033 = vmatpush1.msra.mxu0 0.0
    %1034 = vmatprep.subr.mxu0 0.0
    %1035 = vmatpush1.msra.mxu0 0.0
    %1036 = vmatprep.subr.mxu0 0.0
    %1037 = vmatpush1.msra.mxu0 0.0
    %1038 = vmatprep.subr.mxu0 0.0
    %1039 = vmatpush1.msra.mxu0 0.0
    %1040 = vmatprep.subr.mxu0 0.0
    %1041 = vmatpush1.msra.mxu0 0.0
    %1042 = vmatprep.subr.mxu0 0.0
    %1043 = vmatpush1.msra.mxu0 0.0
    %1044 = vmatprep.subr.mxu0 0.0
    %1045 = vmatpush1.msra.mxu0 0.0
    %1046 = vmatprep.subr.mxu0 0.0
    %1047 = vmatpush1.msra.mxu0 0.0
    %1048 = vmatprep.subr.mxu0 0.0
    %1049 = vmatpush1.msra.mxu0 0.0
    %1050 = vmatprep.subr.mxu0 0.0
    %1051 = vmatpush1.msra.mxu0 0.0
    %1052 = vmatprep.subr.mxu0 0.0
    %1053 = vmatpush1.msra.mxu0 0.0
    %1054 = vmatprep.mubr.f32.mxu0 0.0
    %1055 = vmatmul.mubr.f32.gmra.mrb[0].mxu0 %v988
    %v1056 = vpop.f32.mrb[0].mxu0
    %v1057 = vadd.f32 0.0, %v1056
    %v1058 = vpop.f32.mrb[0].mxu0
    %1059 = vdwg.mxu0
    %v1061 = vrot.slane %v1057, 6
    %v1062 = vrot.slane %v1057, 7
    %v1065 = vadd.f32 %v782, %v1061
    %v1066 = vadd.f32 %v787, %v1062
    %v1067 = vxor.u32 %v1065, 2147483648
    %v1068 = vxor.u32 %v1066, 2147483648
    %v1069 = vmul.f32 %v1067, 1.442695
    %v1070 = vpow.pop %v1069
    %v1071 = vmul.f32 %v1068, 1.442695
    %v1072 = vpow.pop %v1071
    %v1073 = vadd.f32 %v1070, 1.0
    %v1074 = vadd.f32 %v1072, 1.0
    %v1075 = vrcp.pop %v1073
    %v1076 = vmul.f32 1.0, %v1075
    %v1077 = vrcp.pop %v1074
    %v1078 = vmul.f32 1.0, %v1077
    %v1079 = vtanh.pop %v1065
    %v1080 = vtanh.pop %v1066
    %v1083 = vrot.slane %v968, 7
    %v1084 = vrot.slane %v969, 7
    %v1087 = vmul.f32 %v1076, %v1083
    %v1088 = vmul.f32 %v1078, %v1084
    %1091 = vrot.lane.b32.xlu0 %v1079, 64
    %v1092 = vpop.permute.xlu0 %1091
    %1093 = vrot.lane.b32.xlu0 %v1080, 64
    %v1094 = vpop.permute.xlu0 %1093
    %v1097 = vmul.f32 %v1076, %v1092
    %v1098 = vmul.f32 %v1078, %v1094
    %1101 = vrot.lane.b32.xlu0 %v1097, 32
    %v1102 = vpop.permute.xlu0 %1101
    %1103 = vrot.lane.b32.xlu0 %v1098, 32
    %v1104 = vpop.permute.xlu0 %1103
    %v1107 = vadd.f32 %v1087, %v1102
    %v1108 = vadd.f32 %v1088, %v1104
    %v1109 = vtanh.pop %v1107
    %v1110 = vtanh.pop %v1108
    %1113 = vrot.lane.b32.xlu0 %v1109, 64
    %v1114 = vpop.permute.xlu0 %1113
    %1115 = vrot.lane.b32.xlu0 %v1110, 64
    %v1116 = vpop.permute.xlu0 %1115
    %v1119 = vmul.f32 %v1076, %v1114
    %v1120 = vmul.f32 %v1078, %v1116
    %v1123 = vrot.slane %v1119, 2
    %v1124 = vrot.slane %v1120, 1
    %v1125 = vsel %vm845, %v1124, %v1123
    %1126 = vrot.lane.b32.xlu0 %v1125, 32
    %v1127 = vpop.permute.xlu0 %1126
    %v1128 = vsel %vm849, %v1127, 0
    %1130 = vmatprep.subr.mxu0 0.0
    %1131 = vmatpush1.msra.mxu0 %v790
    %1132 = vmatprep.subr.mxu0 0.0
    %1133 = vmatpush1.msra.mxu0 %v791
    %1134 = vmatprep.subr.mxu0 0.0
    %1135 = vmatpush1.msra.mxu0 %v792
    %1136 = vmatprep.subr.mxu0 0.0
    %1137 = vmatpush1.msra.mxu0 %v793
    %1138 = vmatprep.subr.mxu0 0.0
    %1139 = vmatpush1.msra.mxu0 0.0
    %1140 = vmatprep.subr.mxu0 0.0
    %1141 = vmatpush1.msra.mxu0 0.0
    %1142 = vmatprep.subr.mxu0 0.0
    %1143 = vmatpush1.msra.mxu0 0.0
    %1144 = vmatprep.subr.mxu0 0.0
    %1145 = vmatpush1.msra.mxu0 0.0
    %1146 = vmatprep.subr.mxu0 0.0
    %1147 = vmatpush1.msra.mxu0 0.0
    %1148 = vmatprep.subr.mxu0 0.0
    %1149 = vmatpush1.msra.mxu0 0.0
    %1150 = vmatprep.subr.mxu0 0.0
    %1151 = vmatpush1.msra.mxu0 0.0
    %1152 = vmatprep.subr.mxu0 0.0
    %1153 = vmatpush1.msra.mxu0 0.0
    %1154 = vmatprep.subr.mxu0 0.0
    %1155 = vmatpush1.msra.mxu0 0.0
    %1156 = vmatprep.subr.mxu0 0.0
    %1157 = vmatpush1.msra.mxu0 0.0
    %1158 = vmatprep.subr.mxu0 0.0
    %1159 = vmatpush1.msra.mxu0 0.0
    %1160 = vmatprep.subr.mxu0 0.0
    %1161 = vmatpush1.msra.mxu0 0.0
    %1162 = vmatprep.subr.mxu0 0.0
    %1163 = vmatpush1.msra.mxu0 0.0
    %1164 = vmatprep.subr.mxu0 0.0
    %1165 = vmatpush1.msra.mxu0 0.0
    %1166 = vmatprep.subr.mxu0 0.0
    %1167 = vmatpush1.msra.mxu0 0.0
    %1168 = vmatprep.subr.mxu0 0.0
    %1169 = vmatpush1.msra.mxu0 0.0
    %1170 = vmatprep.subr.mxu0 0.0
    %1171 = vmatpush1.msra.mxu0 0.0
    %1172 = vmatprep.subr.mxu0 0.0
    %1173 = vmatpush1.msra.mxu0 0.0
    %1174 = vmatprep.subr.mxu0 0.0
    %1175 = vmatpush1.msra.mxu0 0.0
    %1176 = vmatprep.subr.mxu0 0.0
    %1177 = vmatpush1.msra.mxu0 0.0
    %1178 = vmatprep.subr.mxu0 0.0
    %1179 = vmatpush1.msra.mxu0 0.0
    %1180 = vmatprep.subr.mxu0 0.0
    %1181 = vmatpush1.msra.mxu0 0.0
    %1182 = vmatprep.subr.mxu0 0.0
    %1183 = vmatpush1.msra.mxu0 0.0
    %1184 = vmatprep.subr.mxu0 0.0
    %1185 = vmatpush1.msra.mxu0 0.0
    %1186 = vmatprep.subr.mxu0 0.0
    %1187 = vmatpush1.msra.mxu0 0.0
    %1188 = vmatprep.subr.mxu0 0.0
    %1189 = vmatpush1.msra.mxu0 0.0
    %1190 = vmatprep.subr.mxu0 0.0
    %1191 = vmatpush1.msra.mxu0 0.0
    %1192 = vmatprep.subr.mxu0 0.0
    %1193 = vmatpush1.msra.mxu0 0.0
    %1194 = vmatprep.mubr.f32.mxu0 0.0
    %1195 = vmatmul.mubr.f32.gmra.mrb[0].mxu0 %v1128
    %v1196 = vpop.f32.mrb[0].mxu0
    %v1197 = vadd.f32 0.0, %v1196
    %v1198 = vpop.f32.mrb[0].mxu0
    %1199 = vdwg.mxu0
    %v1201 = vrot.slane %v1197, 5
    %v1202 = vrot.slane %v1197, 6
    %v1205 = vadd.f32 %v782, %v1201
    %v1206 = vadd.f32 %v787, %v1202
    %v1207 = vxor.u32 %v1205, 2147483648
    %v1208 = vxor.u32 %v1206, 2147483648
    %v1209 = vmul.f32 %v1207, 1.442695
    %v1210 = vpow.pop %v1209
    %v1211 = vmul.f32 %v1208, 1.442695
    %v1212 = vpow.pop %v1211
    %v1213 = vadd.f32 %v1210, 1.0
    %v1214 = vadd.f32 %v1212, 1.0
    %v1215 = vrcp.pop %v1213
    %v1216 = vmul.f32 1.0, %v1215
    %v1217 = vrcp.pop %v1214
    %v1218 = vmul.f32 1.0, %v1217
    %v1219 = vtanh.pop %v1205
    %v1220 = vtanh.pop %v1206
    %v1223 = vrot.slane %v1107, 7
    %v1224 = vrot.slane %v1108, 7
    %v1227 = vmul.f32 %v1216, %v1223
    %v1228 = vmul.f32 %v1218, %v1224
    %1231 = vrot.lane.b32.xlu0 %v1219, 64
    %v1232 = vpop.permute.xlu0 %1231
    %1233 = vrot.lane.b32.xlu0 %v1220, 64
    %v1234 = vpop.permute.xlu0 %1233
    %v1237 = vmul.f32 %v1216, %v1232
    %v1238 = vmul.f32 %v1218, %v1234
    %1241 = vrot.lane.b32.xlu0 %v1237, 32
    %v1242 = vpop.permute.xlu0 %1241
    %1243 = vrot.lane.b32.xlu0 %v1238, 32
    %v1244 = vpop.permute.xlu0 %1243
    %v1247 = vadd.f32 %v1227, %v1242
    %v1248 = vadd.f32 %v1228, %v1244
    %v1249 = vtanh.pop %v1247
    %v1250 = vtanh.pop %v1248
    %1253 = vrot.lane.b32.xlu0 %v1249, 64
    %v1254 = vpop.permute.xlu0 %1253
    %1255 = vrot.lane.b32.xlu0 %v1250, 64
    %v1256 = vpop.permute.xlu0 %1255
    %v1259 = vmul.f32 %v1216, %v1254
    %v1260 = vmul.f32 %v1218, %v1256
    %v1263 = vrot.slane %v1259, 3
    %v1264 = vrot.slane %v1260, 2
    %v1265 = vsel %vm845, %v1264, %v1263
    %1266 = vrot.lane.b32.xlu0 %v1265, 32
    %v1267 = vpop.permute.xlu0 %1266
    %v1268 = vsel %vm849, %v1267, 0
    %1270 = vmatprep.subr.mxu0 0.0
    %1271 = vmatpush1.msra.mxu0 %v790
    %1272 = vmatprep.subr.mxu0 0.0
    %1273 = vmatpush1.msra.mxu0 %v791
    %1274 = vmatprep.subr.mxu0 0.0
    %1275 = vmatpush1.msra.mxu0 %v792
    %1276 = vmatprep.subr.mxu0 0.0
    %1277 = vmatpush1.msra.mxu0 %v793
    %1278 = vmatprep.subr.mxu0 0.0
    %1279 = vmatpush1.msra.mxu0 0.0
    %1280 = vmatprep.subr.mxu0 0.0
    %1281 = vmatpush1.msra.mxu0 0.0
    %1282 = vmatprep.subr.mxu0 0.0
    %1283 = vmatpush1.msra.mxu0 0.0
    %1284 = vmatprep.subr.mxu0 0.0
    %1285 = vmatpush1.msra.mxu0 0.0
    %1286 = vmatprep.subr.mxu0 0.0
    %1287 = vmatpush1.msra.mxu0 0.0
    %1288 = vmatprep.subr.mxu0 0.0
    %1289 = vmatpush1.msra.mxu0 0.0
    %1290 = vmatprep.subr.mxu0 0.0
    %1291 = vmatpush1.msra.mxu0 0.0
    %1292 = vmatprep.subr.mxu0 0.0
    %1293 = vmatpush1.msra.mxu0 0.0
    %1294 = vmatprep.subr.mxu0 0.0
    %1295 = vmatpush1.msra.mxu0 0.0
    %1296 = vmatprep.subr.mxu0 0.0
    %1297 = vmatpush1.msra.mxu0 0.0
    %1298 = vmatprep.subr.mxu0 0.0
    %1299 = vmatpush1.msra.mxu0 0.0
    %1300 = vmatprep.subr.mxu0 0.0
    %1301 = vmatpush1.msra.mxu0 0.0
    %1302 = vmatprep.subr.mxu0 0.0
    %1303 = vmatpush1.msra.mxu0 0.0
    %1304 = vmatprep.subr.mxu0 0.0
    %1305 = vmatpush1.msra.mxu0 0.0
    %1306 = vmatprep.subr.mxu0 0.0
    %1307 = vmatpush1.msra.mxu0 0.0
    %1308 = vmatprep.subr.mxu0 0.0
    %1309 = vmatpush1.msra.mxu0 0.0
    %1310 = vmatprep.subr.mxu0 0.0
    %1311 = vmatpush1.msra.mxu0 0.0
    %1312 = vmatprep.subr.mxu0 0.0
    %1313 = vmatpush1.msra.mxu0 0.0
    %1314 = vmatprep.subr.mxu0 0.0
    %1315 = vmatpush1.msra.mxu0 0.0
    %1316 = vmatprep.subr.mxu0 0.0
    %1317 = vmatpush1.msra.mxu0 0.0
    %1318 = vmatprep.subr.mxu0 0.0
    %1319 = vmatpush1.msra.mxu0 0.0
    %1320 = vmatprep.subr.mxu0 0.0
    %1321 = vmatpush1.msra.mxu0 0.0
    %1322 = vmatprep.subr.mxu0 0.0
    %1323 = vmatpush1.msra.mxu0 0.0
    %1324 = vmatprep.subr.mxu0 0.0
    %1325 = vmatpush1.msra.mxu0 0.0
    %1326 = vmatprep.subr.mxu0 0.0
    %1327 = vmatpush1.msra.mxu0 0.0
    %1328 = vmatprep.subr.mxu0 0.0
    %1329 = vmatpush1.msra.mxu0 0.0
    %1330 = vmatprep.subr.mxu0 0.0
    %1331 = vmatpush1.msra.mxu0 0.0
    %1332 = vmatprep.subr.mxu0 0.0
    %1333 = vmatpush1.msra.mxu0 0.0
    %1334 = vmatprep.mubr.f32.mxu0 0.0
    %1335 = vmatmul.mubr.f32.gmra.mrb[0].mxu0 %v1268
    %v1336 = vpop.f32.mrb[0].mxu0
    %v1337 = vadd.f32 0.0, %v1336
    %v1338 = vpop.f32.mrb[0].mxu0
    %1339 = vdwg.mxu0
    %v1341 = vrot.slane %v1337, 4
    %v1342 = vrot.slane %v1337, 5
    %v1345 = vadd.f32 %v782, %v1341
    %v1346 = vadd.f32 %v787, %v1342
    %v1347 = vxor.u32 %v1345, 2147483648
    %v1348 = vxor.u32 %v1346, 2147483648
    %v1349 = vmul.f32 %v1347, 1.442695
    %v1350 = vpow.pop %v1349
    %v1351 = vmul.f32 %v1348, 1.442695
    %v1352 = vpow.pop %v1351
    %v1353 = vadd.f32 %v1350, 1.0
    %v1354 = vadd.f32 %v1352, 1.0
    %v1355 = vrcp.pop %v1353
    %v1356 = vmul.f32 1.0, %v1355
    %v1357 = vrcp.pop %v1354
    %v1358 = vmul.f32 1.0, %v1357
    %v1359 = vtanh.pop %v1345
    %v1360 = vtanh.pop %v1346
    %v1363 = vrot.slane %v1247, 7
    %v1364 = vrot.slane %v1248, 7
    %v1367 = vmul.f32 %v1356, %v1363
    %v1368 = vmul.f32 %v1358, %v1364
    %1371 = vrot.lane.b32.xlu0 %v1359, 64
    %v1372 = vpop.permute.xlu0 %1371
    %1373 = vrot.lane.b32.xlu0 %v1360, 64
    %v1374 = vpop.permute.xlu0 %1373
    %v1377 = vmul.f32 %v1356, %v1372
    %v1378 = vmul.f32 %v1358, %v1374
    %1381 = vrot.lane.b32.xlu0 %v1377, 32
    %v1382 = vpop.permute.xlu0 %1381
    %1383 = vrot.lane.b32.xlu0 %v1378, 32
    %v1384 = vpop.permute.xlu0 %1383
    %v1387 = vadd.f32 %v1367, %v1382
    %v1388 = vadd.f32 %v1368, %v1384
    %v1389 = vtanh.pop %v1387
    %v1390 = vtanh.pop %v1388
    %1393 = vrot.lane.b32.xlu0 %v1389, 64
    %v1394 = vpop.permute.xlu0 %1393
    %1395 = vrot.lane.b32.xlu0 %v1390, 64
    %v1396 = vpop.permute.xlu0 %1395
    %v1399 = vmul.f32 %v1356, %v1394
    %v1400 = vmul.f32 %v1358, %v1396
    %v1403 = vrot.slane %v1399, 4
    %v1404 = vrot.slane %v1400, 3
    %v1405 = vsel %vm845, %v1404, %v1403
    %1406 = vrot.lane.b32.xlu0 %v1405, 32
    %v1407 = vpop.permute.xlu0 %1406
    %v1408 = vsel %vm849, %v1407, 0
    %1410 = vmatprep.subr.mxu0 0.0
    %1411 = vmatpush1.msra.mxu0 %v790
    %1412 = vmatprep.subr.mxu0 0.0
    %1413 = vmatpush1.msra.mxu0 %v791
    %1414 = vmatprep.subr.mxu0 0.0
    %1415 = vmatpush1.msra.mxu0 %v792
    %1416 = vmatprep.subr.mxu0 0.0
    %1417 = vmatpush1.msra.mxu0 %v793
    %1418 = vmatprep.subr.mxu0 0.0
    %1419 = vmatpush1.msra.mxu0 0.0
    %1420 = vmatprep.subr.mxu0 0.0
    %1421 = vmatpush1.msra.mxu0 0.0
    %1422 = vmatprep.subr.mxu0 0.0
    %1423 = vmatpush1.msra.mxu0 0.0
    %1424 = vmatprep.subr.mxu0 0.0
    %1425 = vmatpush1.msra.mxu0 0.0
    %1426 = vmatprep.subr.mxu0 0.0
    %1427 = vmatpush1.msra.mxu0 0.0
    %1428 = vmatprep.subr.mxu0 0.0
    %1429 = vmatpush1.msra.mxu0 0.0
    %1430 = vmatprep.subr.mxu0 0.0
    %1431 = vmatpush1.msra.mxu0 0.0
    %1432 = vmatprep.subr.mxu0 0.0
    %1433 = vmatpush1.msra.mxu0 0.0
    %1434 = vmatprep.subr.mxu0 0.0
    %1435 = vmatpush1.msra.mxu0 0.0
    %1436 = vmatprep.subr.mxu0 0.0
    %1437 = vmatpush1.msra.mxu0 0.0
    %1438 = vmatprep.subr.mxu0 0.0
    %1439 = vmatpush1.msra.mxu0 0.0
    %1440 = vmatprep.subr.mxu0 0.0
    %1441 = vmatpush1.msra.mxu0 0.0
    %1442 = vmatprep.subr.mxu0 0.0
    %1443 = vmatpush1.msra.mxu0 0.0
    %1444 = vmatprep.subr.mxu0 0.0
    %1445 = vmatpush1.msra.mxu0 0.0
    %1446 = vmatprep.subr.mxu0 0.0
    %1447 = vmatpush1.msra.mxu0 0.0
    %1448 = vmatprep.subr.mxu0 0.0
    %1449 = vmatpush1.msra.mxu0 0.0
    %1450 = vmatprep.subr.mxu0 0.0
    %1451 = vmatpush1.msra.mxu0 0.0
    %1452 = vmatprep.subr.mxu0 0.0
    %1453 = vmatpush1.msra.mxu0 0.0
    %1454 = vmatprep.subr.mxu0 0.0
    %1455 = vmatpush1.msra.mxu0 0.0
    %1456 = vmatprep.subr.mxu0 0.0
    %1457 = vmatpush1.msra.mxu0 0.0
    %1458 = vmatprep.subr.mxu0 0.0
    %1459 = vmatpush1.msra.mxu0 0.0
    %1460 = vmatprep.subr.mxu0 0.0
    %1461 = vmatpush1.msra.mxu0 0.0
    %1462 = vmatprep.subr.mxu0 0.0
    %1463 = vmatpush1.msra.mxu0 0.0
    %1464 = vmatprep.subr.mxu0 0.0
    %1465 = vmatpush1.msra.mxu0 0.0
    %1466 = vmatprep.subr.mxu0 0.0
    %1467 = vmatpush1.msra.mxu0 0.0
    %1468 = vmatprep.subr.mxu0 0.0
    %1469 = vmatpush1.msra.mxu0 0.0
    %1470 = vmatprep.subr.mxu0 0.0
    %1471 = vmatpush1.msra.mxu0 0.0
    %1472 = vmatprep.subr.mxu0 0.0
    %1473 = vmatpush1.msra.mxu0 0.0
    %1474 = vmatprep.mubr.f32.mxu0 0.0
    %1475 = vmatmul.mubr.f32.gmra.mrb[0].mxu0 %v1408
    %v1476 = vpop.f32.mrb[0].mxu0
    %v1477 = vadd.f32 0.0, %v1476
    %v1478 = vpop.f32.mrb[0].mxu0
    %1479 = vdwg.mxu0
    %v1481 = vrot.slane %v1477, 3
    %v1482 = vrot.slane %v1477, 4
    %v1485 = vadd.f32 %v782, %v1481
    %v1486 = vadd.f32 %v787, %v1482
    %v1487 = vxor.u32 %v1485, 2147483648
    %v1488 = vxor.u32 %v1486, 2147483648
    %v1489 = vmul.f32 %v1487, 1.442695
    %v1490 = vpow.pop %v1489
    %v1491 = vmul.f32 %v1488, 1.442695
    %v1492 = vpow.pop %v1491
    %v1493 = vadd.f32 %v1490, 1.0
    %v1494 = vadd.f32 %v1492, 1.0
    %v1495 = vrcp.pop %v1493
    %v1496 = vmul.f32 1.0, %v1495
    %v1497 = vrcp.pop %v1494
    %v1498 = vmul.f32 1.0, %v1497
    %v1499 = vtanh.pop %v1485
    %v1500 = vtanh.pop %v1486
    %v1503 = vrot.slane %v1387, 7
    %v1504 = vrot.slane %v1388, 7
    %v1507 = vmul.f32 %v1496, %v1503
    %v1508 = vmul.f32 %v1498, %v1504
    %1511 = vrot.lane.b32.xlu0 %v1499, 64
    %v1512 = vpop.permute.xlu0 %1511
    %1513 = vrot.lane.b32.xlu0 %v1500, 64
    %v1514 = vpop.permute.xlu0 %1513
    %v1517 = vmul.f32 %v1496, %v1512
    %v1518 = vmul.f32 %v1498, %v1514
    %1521 = vrot.lane.b32.xlu0 %v1517, 32
    %v1522 = vpop.permute.xlu0 %1521
    %1523 = vrot.lane.b32.xlu0 %v1518, 32
    %v1524 = vpop.permute.xlu0 %1523
    %v1527 = vadd.f32 %v1507, %v1522
    %v1528 = vadd.f32 %v1508, %v1524
    %v1529 = vtanh.pop %v1527
    %v1530 = vtanh.pop %v1528
    %1533 = vrot.lane.b32.xlu0 %v1529, 64
    %v1534 = vpop.permute.xlu0 %1533
    %1535 = vrot.lane.b32.xlu0 %v1530, 64
    %v1536 = vpop.permute.xlu0 %1535
    %v1539 = vmul.f32 %v1496, %v1534
    %v1540 = vmul.f32 %v1498, %v1536
    %v1543 = vrot.slane %v1539, 5
    %v1544 = vrot.slane %v1540, 4
    %v1545 = vsel %vm845, %v1544, %v1543
    %1546 = vrot.lane.b32.xlu0 %v1545, 32
    %v1547 = vpop.permute.xlu0 %1546
    %v1548 = vsel %vm849, %v1547, 0
    %1550 = vmatprep.subr.mxu0 0.0
    %1551 = vmatpush1.msra.mxu0 %v790
    %1552 = vmatprep.subr.mxu0 0.0
    %1553 = vmatpush1.msra.mxu0 %v791
    %1554 = vmatprep.subr.mxu0 0.0
    %1555 = vmatpush1.msra.mxu0 %v792
    %1556 = vmatprep.subr.mxu0 0.0
    %1557 = vmatpush1.msra.mxu0 %v793
    %1558 = vmatprep.subr.mxu0 0.0
    %1559 = vmatpush1.msra.mxu0 0.0
    %1560 = vmatprep.subr.mxu0 0.0
    %1561 = vmatpush1.msra.mxu0 0.0
    %1562 = vmatprep.subr.mxu0 0.0
    %1563 = vmatpush1.msra.mxu0 0.0
    %1564 = vmatprep.subr.mxu0 0.0
    %1565 = vmatpush1.msra.mxu0 0.0
    %1566 = vmatprep.subr.mxu0 0.0
    %1567 = vmatpush1.msra.mxu0 0.0
    %1568 = vmatprep.subr.mxu0 0.0
    %1569 = vmatpush1.msra.mxu0 0.0
    %1570 = vmatprep.subr.mxu0 0.0
    %1571 = vmatpush1.msra.mxu0 0.0
    %1572 = vmatprep.subr.mxu0 0.0
    %1573 = vmatpush1.msra.mxu0 0.0
    %1574 = vmatprep.subr.mxu0 0.0
    %1575 = vmatpush1.msra.mxu0 0.0
    %1576 = vmatprep.subr.mxu0 0.0
    %1577 = vmatpush1.msra.mxu0 0.0
    %1578 = vmatprep.subr.mxu0 0.0
    %1579 = vmatpush1.msra.mxu0 0.0
    %1580 = vmatprep.subr.mxu0 0.0
    %1581 = vmatpush1.msra.mxu0 0.0
    %1582 = vmatprep.subr.mxu0 0.0
    %1583 = vmatpush1.msra.mxu0 0.0
    %1584 = vmatprep.subr.mxu0 0.0
    %1585 = vmatpush1.msra.mxu0 0.0
    %1586 = vmatprep.subr.mxu0 0.0
    %1587 = vmatpush1.msra.mxu0 0.0
    %1588 = vmatprep.subr.mxu0 0.0
    %1589 = vmatpush1.msra.mxu0 0.0
    %1590 = vmatprep.subr.mxu0 0.0
    %1591 = vmatpush1.msra.mxu0 0.0
    %1592 = vmatprep.subr.mxu0 0.0
    %1593 = vmatpush1.msra.mxu0 0.0
    %1594 = vmatprep.subr.mxu0 0.0
    %1595 = vmatpush1.msra.mxu0 0.0
    %1596 = vmatprep.subr.mxu0 0.0
    %1597 = vmatpush1.msra.mxu0 0.0
    %1598 = vmatprep.subr.mxu0 0.0
    %1599 = vmatpush1.msra.mxu0 0.0
    %1600 = vmatprep.subr.mxu0 0.0
    %1601 = vmatpush1.msra.mxu0 0.0
    %1602 = vmatprep.subr.mxu0 0.0
    %1603 = vmatpush1.msra.mxu0 0.0
    %1604 = vmatprep.subr.mxu0 0.0
    %1605 = vmatpush1.msra.mxu0 0.0
    %1606 = vmatprep.subr.mxu0 0.0
    %1607 = vmatpush1.msra.mxu0 0.0
    %1608 = vmatprep.subr.mxu0 0.0
    %1609 = vmatpush1.msra.mxu0 0.0
    %1610 = vmatprep.subr.mxu0 0.0
    %1611 = vmatpush1.msra.mxu0 0.0
    %1612 = vmatprep.subr.mxu0 0.0
    %1613 = vmatpush1.msra.mxu0 0.0
    %1614 = vmatprep.mubr.f32.mxu0 0.0
    %1615 = vmatmul.mubr.f32.gmra.mrb[0].mxu0 %v1548
    %v1616 = vpop.f32.mrb[0].mxu0
    %v1617 = vadd.f32 0.0, %v1616
    %v1618 = vpop.f32.mrb[0].mxu0
    %1619 = vdwg.mxu0
    %v1621 = vrot.slane %v1617, 2
    %v1622 = vrot.slane %v1617, 3
    %v1625 = vadd.f32 %v782, %v1621
    %v1626 = vadd.f32 %v787, %v1622
    %v1627 = vxor.u32 %v1625, 2147483648
    %v1628 = vxor.u32 %v1626, 2147483648
    %v1629 = vmul.f32 %v1627, 1.442695
    %v1630 = vpow.pop %v1629
    %v1631 = vmul.f32 %v1628, 1.442695
    %v1632 = vpow.pop %v1631
    %v1633 = vadd.f32 %v1630, 1.0
    %v1634 = vadd.f32 %v1632, 1.0
    %v1635 = vrcp.pop %v1633
    %v1636 = vmul.f32 1.0, %v1635
    %v1637 = vrcp.pop %v1634
    %v1638 = vmul.f32 1.0, %v1637
    %v1639 = vtanh.pop %v1625
    %v1640 = vtanh.pop %v1626
    %v1643 = vrot.slane %v1527, 7
    %v1644 = vrot.slane %v1528, 7
    %v1647 = vmul.f32 %v1636, %v1643
    %v1648 = vmul.f32 %v1638, %v1644
    %1651 = vrot.lane.b32.xlu0 %v1639, 64
    %v1652 = vpop.permute.xlu0 %1651
    %1653 = vrot.lane.b32.xlu0 %v1640, 64
    %v1654 = vpop.permute.xlu0 %1653
    %v1657 = vmul.f32 %v1636, %v1652
    %v1658 = vmul.f32 %v1638, %v1654
    %1661 = vrot.lane.b32.xlu0 %v1657, 32
    %v1662 = vpop.permute.xlu0 %1661
    %1663 = vrot.lane.b32.xlu0 %v1658, 32
    %v1664 = vpop.permute.xlu0 %1663
    %v1667 = vadd.f32 %v1647, %v1662
    %v1668 = vadd.f32 %v1648, %v1664
    %v1669 = vtanh.pop %v1667
    %v1670 = vtanh.pop %v1668
    %1673 = vrot.lane.b32.xlu0 %v1669, 64
    %v1674 = vpop.permute.xlu0 %1673
    %1675 = vrot.lane.b32.xlu0 %v1670, 64
    %v1676 = vpop.permute.xlu0 %1675
    %v1679 = vmul.f32 %v1636, %v1674
    %v1680 = vmul.f32 %v1638, %v1676
    %v1683 = vrot.slane %v1679, 6
    %v1684 = vrot.slane %v1680, 5
    %v1685 = vsel %vm845, %v1684, %v1683
    %1686 = vrot.lane.b32.xlu0 %v1685, 32
    %v1687 = vpop.permute.xlu0 %1686
    %v1688 = vsel %vm849, %v1687, 0
    %1690 = vmatprep.subr.mxu0 0.0
    %1691 = vmatpush1.msra.mxu0 %v790
    %1692 = vmatprep.subr.mxu0 0.0
    %1693 = vmatpush1.msra.mxu0 %v791
    %1694 = vmatprep.subr.mxu0 0.0
    %1695 = vmatpush1.msra.mxu0 %v792
    %1696 = vmatprep.subr.mxu0 0.0
    %1697 = vmatpush1.msra.mxu0 %v793
    %1698 = vmatprep.subr.mxu0 0.0
    %1699 = vmatpush1.msra.mxu0 0.0
    %1700 = vmatprep.subr.mxu0 0.0
    %1701 = vmatpush1.msra.mxu0 0.0
    %1702 = vmatprep.subr.mxu0 0.0
    %1703 = vmatpush1.msra.mxu0 0.0
    %1704 = vmatprep.subr.mxu0 0.0
    %1705 = vmatpush1.msra.mxu0 0.0
    %1706 = vmatprep.subr.mxu0 0.0
    %1707 = vmatpush1.msra.mxu0 0.0
    %1708 = vmatprep.subr.mxu0 0.0
    %1709 = vmatpush1.msra.mxu0 0.0
    %1710 = vmatprep.subr.mxu0 0.0
    %1711 = vmatpush1.msra.mxu0 0.0
    %1712 = vmatprep.subr.mxu0 0.0
    %1713 = vmatpush1.msra.mxu0 0.0
    %1714 = vmatprep.subr.mxu0 0.0
    %1715 = vmatpush1.msra.mxu0 0.0
    %1716 = vmatprep.subr.mxu0 0.0
    %1717 = vmatpush1.msra.mxu0 0.0
    %1718 = vmatprep.subr.mxu0 0.0
    %1719 = vmatpush1.msra.mxu0 0.0
    %1720 = vmatprep.subr.mxu0 0.0
    %1721 = vmatpush1.msra.mxu0 0.0
    %1722 = vmatprep.subr.mxu0 0.0
    %1723 = vmatpush1.msra.mxu0 0.0
    %1724 = vmatprep.subr.mxu0 0.0
    %1725 = vmatpush1.msra.mxu0 0.0
    %1726 = vmatprep.subr.mxu0 0.0
    %1727 = vmatpush1.msra.mxu0 0.0
    %1728 = vmatprep.subr.mxu0 0.0
    %1729 = vmatpush1.msra.mxu0 0.0
    %1730 = vmatprep.subr.mxu0 0.0
    %1731 = vmatpush1.msra.mxu0 0.0
    %1732 = vmatprep.subr.mxu0 0.0
    %1733 = vmatpush1.msra.mxu0 0.0
    %1734 = vmatprep.subr.mxu0 0.0
    %1735 = vmatpush1.msra.mxu0 0.0
    %1736 = vmatprep.subr.mxu0 0.0
    %1737 = vmatpush1.msra.mxu0 0.0
    %1738 = vmatprep.subr.mxu0 0.0
    %1739 = vmatpush1.msra.mxu0 0.0
    %1740 = vmatprep.subr.mxu0 0.0
    %1741 = vmatpush1.msra.mxu0 0.0
    %1742 = vmatprep.subr.mxu0 0.0
    %1743 = vmatpush1.msra.mxu0 0.0
    %1744 = vmatprep.subr.mxu0 0.0
    %1745 = vmatpush1.msra.mxu0 0.0
    %1746 = vmatprep.subr.mxu0 0.0
    %1747 = vmatpush1.msra.mxu0 0.0
    %1748 = vmatprep.subr.mxu0 0.0
    %1749 = vmatpush1.msra.mxu0 0.0
    %1750 = vmatprep.subr.mxu0 0.0
    %1751 = vmatpush1.msra.mxu0 0.0
    %1752 = vmatprep.subr.mxu0 0.0
    %1753 = vmatpush1.msra.mxu0 0.0
    %1754 = vmatprep.mubr.f32.mxu0 0.0
    %1755 = vmatmul.mubr.f32.gmra.mrb[0].mxu0 %v1688
    %v1756 = vpop.f32.mrb[0].mxu0
    %v1757 = vadd.f32 0.0, %v1756
    %v1758 = vpop.f32.mrb[0].mxu0
    %1759 = vdwg.mxu0
    %v1761 = vrot.slane %v1757, 1
    %v1762 = vrot.slane %v1757, 2
    %v1765 = vadd.f32 %v782, %v1761
    %v1766 = vadd.f32 %v787, %v1762
    %v1767 = vxor.u32 %v1765, 2147483648
    %v1768 = vxor.u32 %v1766, 2147483648
    %v1769 = vmul.f32 %v1767, 1.442695
    %v1770 = vpow.pop %v1769
    %v1771 = vmul.f32 %v1768, 1.442695
    %v1772 = vpow.pop %v1771
    %v1773 = vadd.f32 %v1770, 1.0
    %v1774 = vadd.f32 %v1772, 1.0
    %v1775 = vrcp.pop %v1773
    %v1776 = vmul.f32 1.0, %v1775
    %v1777 = vrcp.pop %v1774
    %v1778 = vmul.f32 1.0, %v1777
    %v1779 = vtanh.pop %v1765
    %v1780 = vtanh.pop %v1766
    %v1783 = vrot.slane %v1667, 7
    %v1784 = vrot.slane %v1668, 7
    %v1787 = vmul.f32 %v1776, %v1783
    %v1788 = vmul.f32 %v1778, %v1784
    %1791 = vrot.lane.b32.xlu0 %v1779, 64
    %v1792 = vpop.permute.xlu0 %1791
    %1793 = vrot.lane.b32.xlu0 %v1780, 64
    %v1794 = vpop.permute.xlu0 %1793
    %v1797 = vmul.f32 %v1776, %v1792
    %v1798 = vmul.f32 %v1778, %v1794
    %1801 = vrot.lane.b32.xlu0 %v1797, 32
    %v1802 = vpop.permute.xlu0 %1801
    %1803 = vrot.lane.b32.xlu0 %v1798, 32
    %v1804 = vpop.permute.xlu0 %1803
    %v1807 = vadd.f32 %v1787, %v1802
    %v1808 = vadd.f32 %v1788, %v1804
    %v1809 = vtanh.pop %v1807
    %v1810 = vtanh.pop %v1808
    %1813 = vrot.lane.b32.xlu0 %v1809, 64
    %v1814 = vpop.permute.xlu0 %1813
    %1815 = vrot.lane.b32.xlu0 %v1810, 64
    %v1816 = vpop.permute.xlu0 %1815
    %v1819 = vmul.f32 %v1776, %v1814
    %v1820 = vmul.f32 %v1778, %v1816
    %v1821 = vld [vmem:[%s8] sm:$0xff]
    %v1822 = vld [vmem:[%s8 + $0x8] sm:$0xff]
    %v1823 = vld [vmem:[%s8 + $0x10] sm:$0xff]
    %v1824 = vld [vmem:[%s8 + $0x18] sm:$0xff]
    %v1825 = vld [vmem:[%s9] sm:$0x1]
    %v1827 = vlaneseq
    %v1828 = vshrl.u32 %v1827, 7
    %v1829 = vsub.s32 0, %v1828
    %v1830 = vrot.slane %v1825, %v1829
    %v1834 = vrot.slane %v1819, 7
    %v1835 = vrot.slane %v1820, 6
    %v1836 = vsel %vm845, %v1835, %v1834
    %1837 = vrot.lane.b32.xlu0 %v1836, 32
    %v1838 = vpop.permute.xlu0 %1837
    %v1839 = vsel %vm849, %v1838, 0
    %1841 = vmatprep.subr.mxu0 0.0
    %1842 = vmatpush1.msra.mxu0 %v1821
    %1843 = vmatprep.subr.mxu0 0.0
    %1844 = vmatpush1.msra.mxu0 %v1822
    %1845 = vmatprep.subr.mxu0 0.0
    %1846 = vmatpush1.msra.mxu0 %v1823
    %1847 = vmatprep.subr.mxu0 0.0
    %1848 = vmatpush1.msra.mxu0 %v1824
    %1849 = vmatprep.subr.mxu0 0.0
    %1850 = vmatpush1.msra.mxu0 0.0
    %1851 = vmatprep.subr.mxu0 0.0
    %1852 = vmatpush1.msra.mxu0 0.0
    %1853 = vmatprep.subr.mxu0 0.0
    %1854 = vmatpush1.msra.mxu0 0.0
    %1855 = vmatprep.subr.mxu0 0.0
    %1856 = vmatpush1.msra.mxu0 0.0
    %1857 = vmatprep.subr.mxu0 0.0
    %1858 = vmatpush1.msra.mxu0 0.0
    %1859 = vmatprep.subr.mxu0 0.0
    %1860 = vmatpush1.msra.mxu0 0.0
    %1861 = vmatprep.subr.mxu0 0.0
    %1862 = vmatpush1.msra.mxu0 0.0
    %1863 = vmatprep.subr.mxu0 0.0
    %1864 = vmatpush1.msra.mxu0 0.0
    %1865 = vmatprep.subr.mxu0 0.0
    %1866 = vmatpush1.msra.mxu0 0.0
    %1867 = vmatprep.subr.mxu0 0.0
    %1868 = vmatpush1.msra.mxu0 0.0
    %1869 = vmatprep.subr.mxu0 0.0
    %1870 = vmatpush1.msra.mxu0 0.0
    %1871 = vmatprep.subr.mxu0 0.0
    %1872 = vmatpush1.msra.mxu0 0.0
    %1873 = vmatprep.subr.mxu0 0.0
    %1874 = vmatpush1.msra.mxu0 0.0
    %1875 = vmatprep.subr.mxu0 0.0
    %1876 = vmatpush1.msra.mxu0 0.0
    %1877 = vmatprep.subr.mxu0 0.0
    %1878 = vmatpush1.msra.mxu0 0.0
    %1879 = vmatprep.subr.mxu0 0.0
    %1880 = vmatpush1.msra.mxu0 0.0
    %1881 = vmatprep.subr.mxu0 0.0
    %1882 = vmatpush1.msra.mxu0 0.0
    %1883 = vmatprep.subr.mxu0 0.0
    %1884 = vmatpush1.msra.mxu0 0.0
    %1885 = vmatprep.subr.mxu0 0.0
    %1886 = vmatpush1.msra.mxu0 0.0
    %1887 = vmatprep.subr.mxu0 0.0
    %1888 = vmatpush1.msra.mxu0 0.0
    %1889 = vmatprep.subr.mxu0 0.0
    %1890 = vmatpush1.msra.mxu0 0.0
    %1891 = vmatprep.subr.mxu0 0.0
    %1892 = vmatpush1.msra.mxu0 0.0
    %1893 = vmatprep.subr.mxu0 0.0
    %1894 = vmatpush1.msra.mxu0 0.0
    %1895 = vmatprep.subr.mxu0 0.0
    %1896 = vmatpush1.msra.mxu0 0.0
    %1897 = vmatprep.subr.mxu0 0.0
    %1898 = vmatpush1.msra.mxu0 0.0
    %1899 = vmatprep.subr.mxu0 0.0
    %1900 = vmatpush1.msra.mxu0 0.0
    %1901 = vmatprep.subr.mxu0 0.0
    %1902 = vmatpush1.msra.mxu0 0.0
    %1903 = vmatprep.subr.mxu0 0.0
    %1904 = vmatpush1.msra.mxu0 0.0
    %1905 = vmatprep.mubr.f32.mxu0 0.0
    %1906 = vmatmul.mubr.f32.gmra.mrb[0].mxu0 %v1839
    %v1907 = vpop.f32.mrb[0].mxu0
    %v1908 = vadd.f32 %v1830, %v1907
    %v1909 = vpop.f32.mrb[0].mxu0
    %1910 = vdwg.mxu0
    %v1913 = vunpack.c.l.s4 1966171168
    %v1914 = vunpack.c.0.s8 %v1913
    %v1915 = vlaneseq
    %v1916 = vshrl.u32 %v1915, 7
    %v1917 = vsub.s32 %v1914, %v1916
    %v1918 = vrot.slane %v1908, %v1917
    %v1919 = vcombine.high %v1918, %v1918
    %v1921 = vunpack.c.l.s4 1966171168
    %v1922 = vunpack.c.0.s8 %v1921
    %v1923 = vlaneseq
    %v1924 = vshrl.u32 %v1923, 7
    %v1925 = vsub.s32 %v1922, %v1924
    %v1926 = vrot.slane %v1918, %v1925
    %v1928 = vunpack.c.l.s4 1966171168
    %v1929 = vunpack.c.0.s8 %v1928
    %v1930 = vlaneseq
    %v1931 = vshrl.u32 %v1930, 7
    %v1932 = vsub.s32 %v1929, %v1931
    %v1933 = vrot.slane %v1919, %v1932
    %vm1936 = vcmask 32768
    %1937 = vst.msk [vmem:[#allocation2] sm:$0x1] %vm1936, %v1926
    %1938 = vst.msk [vmem:[#allocation2 + $0x1] sm:$0x1] %vm1936, %v1933
    // Predicated region
    $region42: #{tpu_custom_call.1} parent=1 // pred_check
      _
    $region43: #{tpu_custom_call.1} parent=1 // pred_check_branch
      %1940 = sbr.rel (0) target = $region45
    $region44: #{tpu_custom_call.1} parent=1 // pred_region
      %s1942 = ssub.s32 32, 32
      %1943 = vsyncadd [#allocation3], %s1942
      %s1944 = sshll.u32 [#allocation2], 4
      %s1945 = int_to_ptr.vmem [resolvable:$true] %s1944
      %1950 = dma.vmem_to_hbm [thread:$0]  %s1945, 32, %s10, [#allocation3], 16, 16, 1
    $region45: #{tpu_custom_call.1} parent=1 // pred_fallthru
      _
    // Predicated region
    $region46: #{tpu_custom_call.1} parent=1 // pred_check
      _
    $region47: #{tpu_custom_call.1} parent=1 // pred_check_branch
      %1952 = sbr.rel (0) target = $region49
    $region48: #{tpu_custom_call.1} parent=1 // pred_region
      %1953 = dma.done [#allocation3], 32
    $region49: #{tpu_custom_call.1} parent=1 // pred_fallthru
      _
    %1954 = vsyncpa [#allocation3], 1

</llo_original>
